<compile_context>
chip_gen: v7x
topology: tpu7x:2x2x1
jax: 0.10.0
libtpu: 0.0.40
codegen_flags: <defaults>
</compile_context>

<pallas_src>
import functools

import jax
import jax.numpy as jnp
from jax import lax
from jax.experimental import pallas as pl
from jax.experimental.pallas import tpu as pltpu

_LANE = 128
_SUBLANE = 8


def _round_up(x, m):
    return ((x + m - 1) // m) * m


def _vanilla_rnn_kernel(x_ref, len_ref, *refs, seq_len, batch_block, hidden_pad,
                        num_layers):
    """refs = [w_ih_0, w_hh_0, b_0, ..., w_ih_{L-1}, w_hh_{L-1}, b_{L-1},
               w2, b2, o_ref, seq_scratch]

    x_ref:   (T, Bc, I_pad) bf16  time-major input block
    len_ref: (Bc, 1)        i32   per-row sequence length (0 for padded batch rows)
    o_ref:   (T, Bc, O_pad) f32   lane-dense output block
    seq_ref: (T, Bc, H_pad) f32   scratch: holds projection, then each layer's outputs
    """
    layer_refs = refs[:3 * num_layers]
    w2_ref, b2_ref, o_ref, seq_ref = refs[3 * num_layers:]

    rows = seq_len * batch_block
    lengths = len_ref[...]                                   # (Bc, 1) i32

    for l in range(num_layers):
        w_ih = layer_refs[3 * l][...]                        # (in_pad, H_pad) bf16
        w_hh = layer_refs[3 * l + 1][...]                    # (H_pad, H_pad) bf16
        b = layer_refs[3 * l + 2][...]                       # (1, H_pad) f32 (b_ih+b_hh)

        # Hoisted input projection: one MXU matmul covering every (t, b) at once.
        src = x_ref[...] if l == 0 else seq_ref[...].astype(jnp.bfloat16)
        src2d = src.reshape(rows, src.shape[-1])
        proj = jnp.dot(src2d, w_ih, preferred_element_type=jnp.float32) + b
        seq_ref[...] = proj.reshape(seq_len, batch_block, hidden_pad)

        # Batch-vectorized recurrence: one (Bc, H)@(H, H) MXU matmul + tanh per step.
        def step(t, h, w_hh=w_hh):
            pre = seq_ref[t] + jnp.dot(h.astype(jnp.bfloat16), w_hh,
                                       preferred_element_type=jnp.float32)
            h_new = jnp.tanh(pre)
            valid = lengths > t                              # (Bc, 1) bool
            seq_ref[t] = jnp.where(valid, h_new, 0.0)        # pad_packed: padded -> 0
            return jnp.where(valid, h_new, h)                # packed: hold state exactly

        unroll = True if seq_len <= 16 else 4
        lax.fori_loop(0, seq_len, step,
                      jnp.zeros((batch_block, hidden_pad), jnp.float32),
                      unroll=unroll)

    # fc2 + sigmoid over the whole block; lane-dense padded output slab.
    seq2d = seq_ref[...].reshape(rows, hidden_pad).astype(jnp.bfloat16)
    logits = jnp.dot(seq2d, w2_ref[...], preferred_element_type=jnp.float32) + b2_ref[...]
    o_ref[...] = jax.nn.sigmoid(logits).reshape(seq_len, batch_block, o_ref.shape[-1])


def vanilla_rnn_forward(x, lengths, params, *, batch_block=None):
    """x: (B, T, I) f32 batch-first; lengths: (B,) int32 with max(lengths) == T.

    Returns (B*T, O) f32, row b*T + t, matching the torch forward's .view(-1, output_size).
    """
    # TODO(synk): torch's pad_packed_sequence truncates the time axis to max(lengths);
    # here the caller must pass lengths whose max equals T (dynamic output shapes are
    # not expressible in a Pallas kernel).
    B, T, I = x.shape
    num_layers = len(params["w_hh"])
    H = params["w_hh"][0].shape[0]
    O = params["w2"].shape[1]

    I_pad = _round_up(I, _LANE)
    H_pad = _round_up(H, _LANE)
    O_pad = _round_up(O, _LANE)
    B_pad0 = _round_up(B, _SUBLANE)
    if batch_block is None:
        batch_block = min(B_pad0, 128)
    batch_block = _round_up(batch_block, _SUBLANE)
    B_pad = _round_up(B_pad0, batch_block)
    n_blocks = B_pad // batch_block

    # Time-major, tile-padded input and per-row lengths (padded rows get length 0).
    x_tm = jnp.zeros((T, B_pad, I_pad), jnp.float32)
    x_tm = x_tm.at[:, :B, :I].set(jnp.transpose(x, (1, 0, 2))).astype(jnp.bfloat16)
    len_col = jnp.zeros((B_pad, 1), jnp.int32).at[:B, 0].set(lengths.astype(jnp.int32))

    # Tile-padded bf16 weights, f32 biases (b = b_ih + b_hh folded in the wrapper).
    layer_args = []
    for l in range(num_layers):
        in_dim = I if l == 0 else H
        in_pad = I_pad if l == 0 else H_pad
        w_ih = (jnp.zeros((in_pad, H_pad), jnp.float32)
                .at[:in_dim, :H].set(params["w_ih"][l]).astype(jnp.bfloat16))
        w_hh = (jnp.zeros((H_pad, H_pad), jnp.float32)
                .at[:H, :H].set(params["w_hh"][l]).astype(jnp.bfloat16))
        b = jnp.zeros((1, H_pad), jnp.float32).at[:, :H].set(params["b"][l])
        layer_args += [w_ih, w_hh, b]
    w2p = (jnp.zeros((H_pad, O_pad), jnp.float32)
           .at[:H, :O].set(params["w2"]).astype(jnp.bfloat16))
    b2p = jnp.zeros((1, O_pad), jnp.float32).at[:, :O].set(params["b2"])

    def const_spec(shape):
        return pl.BlockSpec(shape, lambda b, _s=len(shape): (0,) * _s)

    in_specs = [
        pl.BlockSpec((T, batch_block, I_pad), lambda b: (0, b, 0)),
        pl.BlockSpec((batch_block, 1), lambda b: (b, 0)),
    ]
    for l in range(num_layers):
        in_pad = I_pad if l == 0 else H_pad
        in_specs += [const_spec((in_pad, H_pad)), const_spec((H_pad, H_pad)),
                     const_spec((1, H_pad))]
    in_specs += [const_spec((H_pad, O_pad)), const_spec((1, O_pad))]
    out_spec = pl.BlockSpec((T, batch_block, O_pad), lambda b: (0, b, 0))

    # Real per-block VMEM footprint, x2 for double buffering, capped below the
    # smallest physical VMEM per TensorCore (64 MiB on v7x).
    weight_bytes = sum(int(a.size) * a.dtype.itemsize for a in layer_args) \
        + int(w2p.size) * 2 + int(b2p.size) * 4
    block_bytes = (T * batch_block * I_pad * 2          # x block (bf16)
                   + batch_block * _LANE * 4            # lengths block (lane-padded)
                   + weight_bytes
                   + T * batch_block * O_pad * 4        # out block
                   + T * batch_block * H_pad * 4)       # seq scratch
    vmem_limit = int(min(48 << 20, max(16 << 20, 2 * block_bytes + (4 << 20))))

    flops = 0
    for l in range(num_layers):
        in_pad = I_pad if l == 0 else H_pad
        flops += 2 * T * B_pad * in_pad * H_pad          # hoisted projection
        flops += 2 * T * B_pad * H_pad * H_pad           # recurrence
    flops += 2 * T * B_pad * H_pad * O_pad               # fc2
    transcendentals = T * B_pad * H_pad * num_layers + T * B_pad * O_pad
    bytes_accessed = (int(x_tm.size) * 2 + int(len_col.size) * 4 + weight_bytes
                      + T * B_pad * O_pad * 4)

    kernel = functools.partial(_vanilla_rnn_kernel, seq_len=T, batch_block=batch_block,
                               hidden_pad=H_pad, num_layers=num_layers)

    out_tm = pl.pallas_call(
        kernel,
        out_shape=jax.ShapeDtypeStruct((T, B_pad, O_pad), jnp.float32),
        grid=(n_blocks,),
        in_specs=in_specs,
        out_specs=out_spec,
        scratch_shapes=[pltpu.VMEM((T, batch_block, H_pad), jnp.float32)],
        compiler_params=pltpu.CompilerParams(
            dimension_semantics=("parallel",),
            vmem_limit_bytes=vmem_limit),
        cost_estimate=pl.CostEstimate(flops=flops, transcendentals=transcendentals,
                                      bytes_accessed=bytes_accessed),
    )(x_tm, len_col, *layer_args, w2p, b2p)

    # Slice the lane/batch padding off BEFORE the transpose (reshuffle O cols, not 128).
    out = out_tm[:, :B, :O]                               # (T, B, O)
    return jnp.transpose(out, (1, 0, 2)).reshape(B * T, O)


def _reference_forward(x, lengths, params):
    """Pure-JAX f32 reference of the packed multi-layer tanh RNN + fc2 + sigmoid."""
    B, T, _ = x.shape
    num_layers = len(params["w_hh"])
    H = params["w_hh"][0].shape[0]
    seq = jnp.transpose(x, (1, 0, 2))                     # (T, B, in)
    for l in range(num_layers):
        h = jnp.zeros((B, H), jnp.float32)
        outs = []
        for t in range(T):
            valid = (t < lengths)[:, None]
            h_new = jnp.tanh(seq[t] @ params["w_ih"][l] + params["b"][l]
                             + h @ params["w_hh"][l])
            h = jnp.where(valid, h_new, h)
            outs.append(jnp.where(valid, h_new, jnp.zeros_like(h_new)))
        seq = jnp.stack(outs)                             # (T, B, H)
    flat = jnp.transpose(seq, (1, 0, 2)).reshape(B * T, H)
    return jax.nn.sigmoid(flat @ params["w2"] + params["b2"])


def init_params(key, input_size, hidden_size, output_size, num_layers):
    keys = jax.random.split(key, 3 * num_layers + 2)
    s = 0.1
    w_ih, w_hh, b = [], [], []
    for l in range(num_layers):
        in_dim = input_size if l == 0 else hidden_size
        w_ih.append(s * jax.random.normal(keys[3 * l], (in_dim, hidden_size), jnp.float32))
        w_hh.append(s * jax.random.normal(keys[3 * l + 1], (hidden_size, hidden_size), jnp.float32))
        b.append(s * jax.random.normal(keys[3 * l + 2], (1, hidden_size), jnp.float32))
    return {
        "w_ih": w_ih, "w_hh": w_hh, "b": b,
        "w2": s * jax.random.normal(keys[-2], (hidden_size, output_size), jnp.float32),
        "b2": s * jax.random.normal(keys[-1], (1, output_size), jnp.float32),
    }


if __name__ == "__main__":
    B, T = 2, 8                         # batch, sequence length
    INPUT, HIDDEN, OUTPUT, LAYERS = 16, 32, 2, 2

    key = jax.random.PRNGKey(0)
    kx, kp = jax.random.split(key)
    x = jax.random.normal(kx, (B, T, INPUT), jnp.float32)
    lengths = jnp.array([T, T - 3], dtype=jnp.int32)   # sorted descending, max == T
    params = init_params(kp, INPUT, HIDDEN, OUTPUT, LAYERS)

    out = jax.block_until_ready(vanilla_rnn_forward(x, lengths, params))
    ref = _reference_forward(x, lengths, params)

    assert out.shape == (B * T, OUTPUT)
    # bf16 MXU operands with f32 accumulation -> compare at a bf16-appropriate tolerance.
    assert jnp.allclose(out, ref, atol=2e-2), "mismatch vs pure-JAX reference"
    print("KERNEL_OK")
</pallas_src>

<mosaic_0001>
module attributes {stable_mosaic.version = 11 : i64} {
  func.func @_vanilla_rnn_kernel(%arg0: i32, %arg1: memref<8x8x128xbf16, #tpu.memory_space<vmem>>, %arg2: memref<8x1xi32, #tpu.memory_space<vmem>>, %arg3: memref<128x128xbf16, #tpu.memory_space<vmem>>, %arg4: memref<128x128xbf16, #tpu.memory_space<vmem>>, %arg5: memref<1x128xf32, #tpu.memory_space<vmem>>, %arg6: memref<128x128xbf16, #tpu.memory_space<vmem>>, %arg7: memref<128x128xbf16, #tpu.memory_space<vmem>>, %arg8: memref<1x128xf32, #tpu.memory_space<vmem>>, %arg9: memref<128x128xbf16, #tpu.memory_space<vmem>>, %arg10: memref<1x128xf32, #tpu.memory_space<vmem>>, %arg11: memref<8x8x128xf32, #tpu.memory_space<vmem>>, %arg12: memref<8x8x128xf32, #tpu.memory_space<vmem>>) attributes {dimension_semantics = [#tpu.dimension_semantics<parallel>], iteration_bounds = array<i64: 1>, scalar_prefetch = 0 : i64, scratch_operands = 1 : i64, tpu.core_type = #tpu.core_type<tc>, window_params = [{transform_indices = @transform_0, window_bounds = array<i64: 8, 8, 128>}, {transform_indices = @transform_1, window_bounds = array<i64: 8, 1>}, {pipeline_mode = #tpu.pipeline_mode<synchronous>, transform_indices = @transform_2, window_bounds = array<i64: 128, 128>}, {pipeline_mode = #tpu.pipeline_mode<synchronous>, transform_indices = @transform_3, window_bounds = array<i64: 128, 128>}, {pipeline_mode = #tpu.pipeline_mode<synchronous>, transform_indices = @transform_4, window_bounds = array<i64: 1, 128>}, {pipeline_mode = #tpu.pipeline_mode<synchronous>, transform_indices = @transform_5, window_bounds = array<i64: 128, 128>}, {pipeline_mode = #tpu.pipeline_mode<synchronous>, transform_indices = @transform_6, window_bounds = array<i64: 128, 128>}, {pipeline_mode = #tpu.pipeline_mode<synchronous>, transform_indices = @transform_7, window_bounds = array<i64: 1, 128>}, {pipeline_mode = #tpu.pipeline_mode<synchronous>, transform_indices = @transform_8, window_bounds = array<i64: 128, 128>}, {pipeline_mode = #tpu.pipeline_mode<synchronous>, transform_indices = @transform_9, window_bounds = array<i64: 1, 128>}, {transform_indices = @transform_10, window_bounds = array<i64: 8, 8, 128>}]} {
    %c0 = arith.constant 0 : index
    %c0_0 = arith.constant 0 : index
    %0 = vector.load %arg2[%c0, %c0_0] : memref<8x1xi32, #tpu.memory_space<vmem>>, vector<8x1xi32>
    %c0_1 = arith.constant 0 : index
    %c0_2 = arith.constant 0 : index
    %1 = vector.load %arg3[%c0_1, %c0_2] : memref<128x128xbf16, #tpu.memory_space<vmem>>, vector<128x128xbf16>
    %c0_3 = arith.constant 0 : index
    %c0_4 = arith.constant 0 : index
    %2 = vector.load %arg4[%c0_3, %c0_4] : memref<128x128xbf16, #tpu.memory_space<vmem>>, vector<128x128xbf16>
    %c0_5 = arith.constant 0 : index
    %c0_6 = arith.constant 0 : index
    %3 = vector.load %arg5[%c0_5, %c0_6] : memref<1x128xf32, #tpu.memory_space<vmem>>, vector<1x128xf32>
    %c0_7 = arith.constant 0 : index
    %c0_8 = arith.constant 0 : index
    %c0_9 = arith.constant 0 : index
    %4 = vector.load %arg1[%c0_7, %c0_8, %c0_9] : memref<8x8x128xbf16, #tpu.memory_space<vmem>>, vector<8x8x128xbf16>
    %5 = vector.shape_cast %4 : vector<8x8x128xbf16> to vector<64x128xbf16>
    %cst = arith.constant dense<0.000000e+00> : vector<64x128xf32>
    %6 = tpu.matmul %5, %1, %cst {dimension_numbers = #tpu.dot_dimension_numbers<[1], [0], [0], [1], [0, 0, 1, 1], [], []>} : vector<64x128xbf16>, vector<128x128xbf16>, vector<64x128xf32> -> vector<64x128xf32>
    %7 = vector.broadcast %3 : vector<1x128xf32> to vector<64x128xf32>
    %8 = arith.addf %6, %7 : vector<64x128xf32>
    %9 = vector.shape_cast %8 : vector<64x128xf32> to vector<8x8x128xf32>
    %c0_10 = arith.constant 0 : index
    %c0_11 = arith.constant 0 : index
    %c0_12 = arith.constant 0 : index
    %10 = vector.load %arg12[%c0_10, %c0_11, %c0_12] : memref<8x8x128xf32, #tpu.memory_space<vmem>>, vector<8x8x128xf32>
    tpu.vector_store %arg12[%c0_10, %c0_11, %c0_12], %9 {strides = array<i32>} : memref<8x8x128xf32, #tpu.memory_space<vmem>>, vector<8x8x128xf32>,
    %cst_13 = arith.constant 0.000000e+00 : f32
    %11 = vector.broadcast %cst_13 : f32 to vector<8x128xf32>
    %c0_i32 = arith.constant 0 : i32
    %12 = arith.index_cast %c0_i32 : i32 to index
    %c0_14 = arith.constant 0 : index
    %c0_15 = arith.constant 0 : index
    %13 = vector.load %arg12[%12, %c0_14, %c0_15] : memref<8x8x128xf32, #tpu.memory_space<vmem>>, vector<1x8x128xf32>
    %14 = vector.shape_cast %13 : vector<1x8x128xf32> to vector<8x128xf32>
    %15 = arith.truncf %11 : vector<8x128xf32> to vector<8x128xbf16>
    %cst_16 = arith.constant dense<0.000000e+00> : vector<8x128xf32>
    %16 = tpu.matmul %15, %2, %cst_16 {dimension_numbers = #tpu.dot_dimension_numbers<[1], [0], [0], [1], [0, 0, 1, 1], [], []>} : vector<8x128xbf16>, vector<128x128xbf16>, vector<8x128xf32> -> vector<8x128xf32>
    %17 = arith.addf %14, %16 : vector<8x128xf32>
    %18 = math.tanh %17 : vector<8x128xf32>
    %19 = vector.broadcast %c0_i32 : i32 to vector<8x1xi32>
    %20 = arith.cmpi sgt, %0, %19 : vector<8x1xi32>
    %cst_17 = arith.constant 0.000000e+00 : f32
    %21 = vector.shape_cast %20 : vector<8x1xi1> to vector<8x1xi1>
    %22 = vector.broadcast %21 : vector<8x1xi1> to vector<8x128xi1>
    %23 = vector.broadcast %cst_17 : f32 to vector<8x128xf32>
    %24 = arith.select %22, %18, %23 : vector<8x128xi1>, vector<8x128xf32>
    %25 = arith.index_cast %c0_i32 : i32 to index
    %c0_18 = arith.constant 0 : index
    %c0_19 = arith.constant 0 : index
    %26 = vector.load %arg12[%25, %c0_18, %c0_19] : memref<8x8x128xf32, #tpu.memory_space<vmem>>, vector<1x8x128xf32>
    %27 = vector.shape_cast %26 : vector<1x8x128xf32> to vector<8x128xf32>
    %28 = vector.shape_cast %24 : vector<8x128xf32> to vector<1x8x128xf32>
    tpu.vector_store %arg12[%25, %c0_18, %c0_19], %28 {strides = array<i32>} : memref<8x8x128xf32, #tpu.memory_space<vmem>>, vector<1x8x128xf32>,
    %29 = vector.shape_cast %20 : vector<8x1xi1> to vector<8x1xi1>
    %30 = vector.broadcast %29 : vector<8x1xi1> to vector<8x128xi1>
    %31 = arith.select %30, %18, %11 : vector<8x128xi1>, vector<8x128xf32>
    %c1_i32 = arith.constant 1 : i32
    %32 = arith.index_cast %c1_i32 : i32 to index
    %c0_20 = arith.constant 0 : index
    %c0_21 = arith.constant 0 : index
    %33 = vector.load %arg12[%32, %c0_20, %c0_21] : memref<8x8x128xf32, #tpu.memory_space<vmem>>, vector<1x8x128xf32>
    %34 = vector.shape_cast %33 : vector<1x8x128xf32> to vector<8x128xf32>
    %35 = arith.truncf %31 : vector<8x128xf32> to vector<8x128xbf16>
    %cst_22 = arith.constant dense<0.000000e+00> : vector<8x128xf32>
    %36 = tpu.matmul %35, %2, %cst_22 {dimension_numbers = #tpu.dot_dimension_numbers<[1], [0], [0], [1], [0, 0, 1, 1], [], []>} : vector<8x128xbf16>, vector<128x128xbf16>, vector<8x128xf32> -> vector<8x128xf32>
    %37 = arith.addf %34, %36 : vector<8x128xf32>
    %38 = math.tanh %37 : vector<8x128xf32>
    %39 = vector.broadcast %c1_i32 : i32 to vector<8x1xi32>
    %40 = arith.cmpi sgt, %0, %39 : vector<8x1xi32>
    %cst_23 = arith.constant 0.000000e+00 : f32
    %41 = vector.shape_cast %40 : vector<8x1xi1> to vector<8x1xi1>
    %42 = vector.broadcast %41 : vector<8x1xi1> to vector<8x128xi1>
    %43 = vector.broadcast %cst_23 : f32 to vector<8x128xf32>
    %44 = arith.select %42, %38, %43 : vector<8x128xi1>, vector<8x128xf32>
    %45 = arith.index_cast %c1_i32 : i32 to index
    %c0_24 = arith.constant 0 : index
    %c0_25 = arith.constant 0 : index
    %46 = vector.load %arg12[%45, %c0_24, %c0_25] : memref<8x8x128xf32, #tpu.memory_space<vmem>>, vector<1x8x128xf32>
    %47 = vector.shape_cast %46 : vector<1x8x128xf32> to vector<8x128xf32>
    %48 = vector.shape_cast %44 : vector<8x128xf32> to vector<1x8x128xf32>
    tpu.vector_store %arg12[%45, %c0_24, %c0_25], %48 {strides = array<i32>} : memref<8x8x128xf32, #tpu.memory_space<vmem>>, vector<1x8x128xf32>,
    %49 = vector.shape_cast %40 : vector<8x1xi1> to vector<8x1xi1>
    %50 = vector.broadcast %49 : vector<8x1xi1> to vector<8x128xi1>
    %51 = arith.select %50, %38, %31 : vector<8x128xi1>, vector<8x128xf32>
    %c2_i32 = arith.constant 2 : i32
    %52 = arith.index_cast %c2_i32 : i32 to index
    %c0_26 = arith.constant 0 : index
    %c0_27 = arith.constant 0 : index
    %53 = vector.load %arg12[%52, %c0_26, %c0_27] : memref<8x8x128xf32, #tpu.memory_space<vmem>>, vector<1x8x128xf32>
    %54 = vector.shape_cast %53 : vector<1x8x128xf32> to vector<8x128xf32>
    %55 = arith.truncf %51 : vector<8x128xf32> to vector<8x128xbf16>
    %cst_28 = arith.constant dense<0.000000e+00> : vector<8x128xf32>
    %56 = tpu.matmul %55, %2, %cst_28 {dimension_numbers = #tpu.dot_dimension_numbers<[1], [0], [0], [1], [0, 0, 1, 1], [], []>} : vector<8x128xbf16>, vector<128x128xbf16>, vector<8x128xf32> -> vector<8x128xf32>
    %57 = arith.addf %54, %56 : vector<8x128xf32>
    %58 = math.tanh %57 : vector<8x128xf32>
    %59 = vector.broadcast %c2_i32 : i32 to vector<8x1xi32>
    %60 = arith.cmpi sgt, %0, %59 : vector<8x1xi32>
    %cst_29 = arith.constant 0.000000e+00 : f32
    %61 = vector.shape_cast %60 : vector<8x1xi1> to vector<8x1xi1>
    %62 = vector.broadcast %61 : vector<8x1xi1> to vector<8x128xi1>
    %63 = vector.broadcast %cst_29 : f32 to vector<8x128xf32>
    %64 = arith.select %62, %58, %63 : vector<8x128xi1>, vector<8x128xf32>
    %65 = arith.index_cast %c2_i32 : i32 to index
    %c0_30 = arith.constant 0 : index
    %c0_31 = arith.constant 0 : index
    %66 = vector.load %arg12[%65, %c0_30, %c0_31] : memref<8x8x128xf32, #tpu.memory_space<vmem>>, vector<1x8x128xf32>
    %67 = vector.shape_cast %66 : vector<1x8x128xf32> to vector<8x128xf32>
    %68 = vector.shape_cast %64 : vector<8x128xf32> to vector<1x8x128xf32>
    tpu.vector_store %arg12[%65, %c0_30, %c0_31], %68 {strides = array<i32>} : memref<8x8x128xf32, #tpu.memory_space<vmem>>, vector<1x8x128xf32>,
    %69 = vector.shape_cast %60 : vector<8x1xi1> to vector<8x1xi1>
    %70 = vector.broadcast %69 : vector<8x1xi1> to vector<8x128xi1>
    %71 = arith.select %70, %58, %51 : vector<8x128xi1>, vector<8x128xf32>
    %c3_i32 = arith.constant 3 : i32
    %72 = arith.index_cast %c3_i32 : i32 to index
    %c0_32 = arith.constant 0 : index
    %c0_33 = arith.constant 0 : index
    %73 = vector.load %arg12[%72, %c0_32, %c0_33] : memref<8x8x128xf32, #tpu.memory_space<vmem>>, vector<1x8x128xf32>
    %74 = vector.shape_cast %73 : vector<1x8x128xf32> to vector<8x128xf32>
    %75 = arith.truncf %71 : vector<8x128xf32> to vector<8x128xbf16>
    %cst_34 = arith.constant dense<0.000000e+00> : vector<8x128xf32>
    %76 = tpu.matmul %75, %2, %cst_34 {dimension_numbers = #tpu.dot_dimension_numbers<[1], [0], [0], [1], [0, 0, 1, 1], [], []>} : vector<8x128xbf16>, vector<128x128xbf16>, vector<8x128xf32> -> vector<8x128xf32>
    %77 = arith.addf %74, %76 : vector<8x128xf32>
    %78 = math.tanh %77 : vector<8x128xf32>
    %79 = vector.broadcast %c3_i32 : i32 to vector<8x1xi32>
    %80 = arith.cmpi sgt, %0, %79 : vector<8x1xi32>
    %cst_35 = arith.constant 0.000000e+00 : f32
    %81 = vector.shape_cast %80 : vector<8x1xi1> to vector<8x1xi1>
    %82 = vector.broadcast %81 : vector<8x1xi1> to vector<8x128xi1>
    %83 = vector.broadcast %cst_35 : f32 to vector<8x128xf32>
    %84 = arith.select %82, %78, %83 : vector<8x128xi1>, vector<8x128xf32>
    %85 = arith.index_cast %c3_i32 : i32 to index
    %c0_36 = arith.constant 0 : index
    %c0_37 = arith.constant 0 : index
    %86 = vector.load %arg12[%85, %c0_36, %c0_37] : memref<8x8x128xf32, #tpu.memory_space<vmem>>, vector<1x8x128xf32>
    %87 = vector.shape_cast %86 : vector<1x8x128xf32> to vector<8x128xf32>
    %88 = vector.shape_cast %84 : vector<8x128xf32> to vector<1x8x128xf32>
    tpu.vector_store %arg12[%85, %c0_36, %c0_37], %88 {strides = array<i32>} : memref<8x8x128xf32, #tpu.memory_space<vmem>>, vector<1x8x128xf32>,
    %89 = vector.shape_cast %80 : vector<8x1xi1> to vector<8x1xi1>
    %90 = vector.broadcast %89 : vector<8x1xi1> to vector<8x128xi1>
    %91 = arith.select %90, %78, %71 : vector<8x128xi1>, vector<8x128xf32>
    %c4_i32 = arith.constant 4 : i32
    %92 = arith.index_cast %c4_i32 : i32 to index
    %c0_38 = arith.constant 0 : index
    %c0_39 = arith.constant 0 : index
    %93 = vector.load %arg12[%92, %c0_38, %c0_39] : memref<8x8x128xf32, #tpu.memory_space<vmem>>, vector<1x8x128xf32>
    %94 = vector.shape_cast %93 : vector<1x8x128xf32> to vector<8x128xf32>
    %95 = arith.truncf %91 : vector<8x128xf32> to vector<8x128xbf16>
    %cst_40 = arith.constant dense<0.000000e+00> : vector<8x128xf32>
    %96 = tpu.matmul %95, %2, %cst_40 {dimension_numbers = #tpu.dot_dimension_numbers<[1], [0], [0], [1], [0, 0, 1, 1], [], []>} : vector<8x128xbf16>, vector<128x128xbf16>, vector<8x128xf32> -> vector<8x128xf32>
    %97 = arith.addf %94, %96 : vector<8x128xf32>
    %98 = math.tanh %97 : vector<8x128xf32>
    %99 = vector.broadcast %c4_i32 : i32 to vector<8x1xi32>
    %100 = arith.cmpi sgt, %0, %99 : vector<8x1xi32>
    %cst_41 = arith.constant 0.000000e+00 : f32
    %101 = vector.shape_cast %100 : vector<8x1xi1> to vector<8x1xi1>
    %102 = vector.broadcast %101 : vector<8x1xi1> to vector<8x128xi1>
    %103 = vector.broadcast %cst_41 : f32 to vector<8x128xf32>
    %104 = arith.select %102, %98, %103 : vector<8x128xi1>, vector<8x128xf32>
    %105 = arith.index_cast %c4_i32 : i32 to index
    %c0_42 = arith.constant 0 : index
    %c0_43 = arith.constant 0 : index
    %106 = vector.load %arg12[%105, %c0_42, %c0_43] : memref<8x8x128xf32, #tpu.memory_space<vmem>>, vector<1x8x128xf32>
    %107 = vector.shape_cast %106 : vector<1x8x128xf32> to vector<8x128xf32>
    %108 = vector.shape_cast %104 : vector<8x128xf32> to vector<1x8x128xf32>
    tpu.vector_store %arg12[%105, %c0_42, %c0_43], %108 {strides = array<i32>} : memref<8x8x128xf32, #tpu.memory_space<vmem>>, vector<1x8x128xf32>,
    %109 = vector.shape_cast %100 : vector<8x1xi1> to vector<8x1xi1>
    %110 = vector.broadcast %109 : vector<8x1xi1> to vector<8x128xi1>
    %111 = arith.select %110, %98, %91 : vector<8x128xi1>, vector<8x128xf32>
    %c5_i32 = arith.constant 5 : i32
    %112 = arith.index_cast %c5_i32 : i32 to index
    %c0_44 = arith.constant 0 : index
    %c0_45 = arith.constant 0 : index
    %113 = vector.load %arg12[%112, %c0_44, %c0_45] : memref<8x8x128xf32, #tpu.memory_space<vmem>>, vector<1x8x128xf32>
    %114 = vector.shape_cast %113 : vector<1x8x128xf32> to vector<8x128xf32>
    %115 = arith.truncf %111 : vector<8x128xf32> to vector<8x128xbf16>
    %cst_46 = arith.constant dense<0.000000e+00> : vector<8x128xf32>
    %116 = tpu.matmul %115, %2, %cst_46 {dimension_numbers = #tpu.dot_dimension_numbers<[1], [0], [0], [1], [0, 0, 1, 1], [], []>} : vector<8x128xbf16>, vector<128x128xbf16>, vector<8x128xf32> -> vector<8x128xf32>
    %117 = arith.addf %114, %116 : vector<8x128xf32>
    %118 = math.tanh %117 : vector<8x128xf32>
    %119 = vector.broadcast %c5_i32 : i32 to vector<8x1xi32>
    %120 = arith.cmpi sgt, %0, %119 : vector<8x1xi32>
    %cst_47 = arith.constant 0.000000e+00 : f32
    %121 = vector.shape_cast %120 : vector<8x1xi1> to vector<8x1xi1>
    %122 = vector.broadcast %121 : vector<8x1xi1> to vector<8x128xi1>
    %123 = vector.broadcast %cst_47 : f32 to vector<8x128xf32>
    %124 = arith.select %122, %118, %123 : vector<8x128xi1>, vector<8x128xf32>
    %125 = arith.index_cast %c5_i32 : i32 to index
    %c0_48 = arith.constant 0 : index
    %c0_49 = arith.constant 0 : index
    %126 = vector.load %arg12[%125, %c0_48, %c0_49] : memref<8x8x128xf32, #tpu.memory_space<vmem>>, vector<1x8x128xf32>
    %127 = vector.shape_cast %126 : vector<1x8x128xf32> to vector<8x128xf32>
    %128 = vector.shape_cast %124 : vector<8x128xf32> to vector<1x8x128xf32>
    tpu.vector_store %arg12[%125, %c0_48, %c0_49], %128 {strides = array<i32>} : memref<8x8x128xf32, #tpu.memory_space<vmem>>, vector<1x8x128xf32>,
    %129 = vector.shape_cast %120 : vector<8x1xi1> to vector<8x1xi1>
    %130 = vector.broadcast %129 : vector<8x1xi1> to vector<8x128xi1>
    %131 = arith.select %130, %118, %111 : vector<8x128xi1>, vector<8x128xf32>
    %c6_i32 = arith.constant 6 : i32
    %132 = arith.index_cast %c6_i32 : i32 to index
    %c0_50 = arith.constant 0 : index
    %c0_51 = arith.constant 0 : index
    %133 = vector.load %arg12[%132, %c0_50, %c0_51] : memref<8x8x128xf32, #tpu.memory_space<vmem>>, vector<1x8x128xf32>
    %134 = vector.shape_cast %133 : vector<1x8x128xf32> to vector<8x128xf32>
    %135 = arith.truncf %131 : vector<8x128xf32> to vector<8x128xbf16>
    %cst_52 = arith.constant dense<0.000000e+00> : vector<8x128xf32>
    %136 = tpu.matmul %135, %2, %cst_52 {dimension_numbers = #tpu.dot_dimension_numbers<[1], [0], [0], [1], [0, 0, 1, 1], [], []>} : vector<8x128xbf16>, vector<128x128xbf16>, vector<8x128xf32> -> vector<8x128xf32>
    %137 = arith.addf %134, %136 : vector<8x128xf32>
    %138 = math.tanh %137 : vector<8x128xf32>
    %139 = vector.broadcast %c6_i32 : i32 to vector<8x1xi32>
    %140 = arith.cmpi sgt, %0, %139 : vector<8x1xi32>
    %cst_53 = arith.constant 0.000000e+00 : f32
    %141 = vector.shape_cast %140 : vector<8x1xi1> to vector<8x1xi1>
    %142 = vector.broadcast %141 : vector<8x1xi1> to vector<8x128xi1>
    %143 = vector.broadcast %cst_53 : f32 to vector<8x128xf32>
    %144 = arith.select %142, %138, %143 : vector<8x128xi1>, vector<8x128xf32>
    %145 = arith.index_cast %c6_i32 : i32 to index
    %c0_54 = arith.constant 0 : index
    %c0_55 = arith.constant 0 : index
    %146 = vector.load %arg12[%145, %c0_54, %c0_55] : memref<8x8x128xf32, #tpu.memory_space<vmem>>, vector<1x8x128xf32>
    %147 = vector.shape_cast %146 : vector<1x8x128xf32> to vector<8x128xf32>
    %148 = vector.shape_cast %144 : vector<8x128xf32> to vector<1x8x128xf32>
    tpu.vector_store %arg12[%145, %c0_54, %c0_55], %148 {strides = array<i32>} : memref<8x8x128xf32, #tpu.memory_space<vmem>>, vector<1x8x128xf32>,
    %149 = vector.shape_cast %140 : vector<8x1xi1> to vector<8x1xi1>
    %150 = vector.broadcast %149 : vector<8x1xi1> to vector<8x128xi1>
    %151 = arith.select %150, %138, %131 : vector<8x128xi1>, vector<8x128xf32>
    %c7_i32 = arith.constant 7 : i32
    %152 = arith.index_cast %c7_i32 : i32 to index
    %c0_56 = arith.constant 0 : index
    %c0_57 = arith.constant 0 : index
    %153 = vector.load %arg12[%152, %c0_56, %c0_57] : memref<8x8x128xf32, #tpu.memory_space<vmem>>, vector<1x8x128xf32>
    %154 = vector.shape_cast %153 : vector<1x8x128xf32> to vector<8x128xf32>
    %155 = arith.truncf %151 : vector<8x128xf32> to vector<8x128xbf16>
    %cst_58 = arith.constant dense<0.000000e+00> : vector<8x128xf32>
    %156 = tpu.matmul %155, %2, %cst_58 {dimension_numbers = #tpu.dot_dimension_numbers<[1], [0], [0], [1], [0, 0, 1, 1], [], []>} : vector<8x128xbf16>, vector<128x128xbf16>, vector<8x128xf32> -> vector<8x128xf32>
    %157 = arith.addf %154, %156 : vector<8x128xf32>
    %158 = math.tanh %157 : vector<8x128xf32>
    %159 = vector.broadcast %c7_i32 : i32 to vector<8x1xi32>
    %160 = arith.cmpi sgt, %0, %159 : vector<8x1xi32>
    %cst_59 = arith.constant 0.000000e+00 : f32
    %161 = vector.shape_cast %160 : vector<8x1xi1> to vector<8x1xi1>
    %162 = vector.broadcast %161 : vector<8x1xi1> to vector<8x128xi1>
    %163 = vector.broadcast %cst_59 : f32 to vector<8x128xf32>
    %164 = arith.select %162, %158, %163 : vector<8x128xi1>, vector<8x128xf32>
    %165 = arith.index_cast %c7_i32 : i32 to index
    %c0_60 = arith.constant 0 : index
    %c0_61 = arith.constant 0 : index
    %166 = vector.load %arg12[%165, %c0_60, %c0_61] : memref<8x8x128xf32, #tpu.memory_space<vmem>>, vector<1x8x128xf32>
    %167 = vector.shape_cast %166 : vector<1x8x128xf32> to vector<8x128xf32>
    %168 = vector.shape_cast %164 : vector<8x128xf32> to vector<1x8x128xf32>
    tpu.vector_store %arg12[%165, %c0_60, %c0_61], %168 {strides = array<i32>} : memref<8x8x128xf32, #tpu.memory_space<vmem>>, vector<1x8x128xf32>,
    %169 = vector.shape_cast %160 : vector<8x1xi1> to vector<8x1xi1>
    %170 = vector.broadcast %169 : vector<8x1xi1> to vector<8x128xi1>
    %171 = arith.select %170, %158, %151 : vector<8x128xi1>, vector<8x128xf32>
    %c8_i32 = arith.constant 8 : i32
    %c0_62 = arith.constant 0 : index
    %c0_63 = arith.constant 0 : index
    %172 = vector.load %arg6[%c0_62, %c0_63] : memref<128x128xbf16, #tpu.memory_space<vmem>>, vector<128x128xbf16>
    %c0_64 = arith.constant 0 : index
    %c0_65 = arith.constant 0 : index
    %173 = vector.load %arg7[%c0_64, %c0_65] : memref<128x128xbf16, #tpu.memory_space<vmem>>, vector<128x128xbf16>
    %c0_66 = arith.constant 0 : index
    %c0_67 = arith.constant 0 : index
    %174 = vector.load %arg8[%c0_66, %c0_67] : memref<1x128xf32, #tpu.memory_space<vmem>>, vector<1x128xf32>
    %c0_68 = arith.constant 0 : index
    %c0_69 = arith.constant 0 : index
    %c0_70 = arith.constant 0 : index
    %175 = vector.load %arg12[%c0_68, %c0_69, %c0_70] : memref<8x8x128xf32, #tpu.memory_space<vmem>>, vector<8x8x128xf32>
    %176 = arith.truncf %175 : vector<8x8x128xf32> to vector<8x8x128xbf16>
    %177 = vector.shape_cast %176 : vector<8x8x128xbf16> to vector<64x128xbf16>
    %cst_71 = arith.constant dense<0.000000e+00> : vector<64x128xf32>
    %178 = tpu.matmul %177, %172, %cst_71 {dimension_numbers = #tpu.dot_dimension_numbers<[1], [0], [0], [1], [0, 0, 1, 1], [], []>} : vector<64x128xbf16>, vector<128x128xbf16>, vector<64x128xf32> -> vector<64x128xf32>
    %179 = vector.broadcast %174 : vector<1x128xf32> to vector<64x128xf32>
    %180 = arith.addf %178, %179 : vector<64x128xf32>
    %181 = vector.shape_cast %180 : vector<64x128xf32> to vector<8x8x128xf32>
    %c0_72 = arith.constant 0 : index
    %c0_73 = arith.constant 0 : index
    %c0_74 = arith.constant 0 : index
    %182 = vector.load %arg12[%c0_72, %c0_73, %c0_74] : memref<8x8x128xf32, #tpu.memory_space<vmem>>, vector<8x8x128xf32>
    tpu.vector_store %arg12[%c0_72, %c0_73, %c0_74], %181 {strides = array<i32>} : memref<8x8x128xf32, #tpu.memory_space<vmem>>, vector<8x8x128xf32>,
    %cst_75 = arith.constant 0.000000e+00 : f32
    %183 = vector.broadcast %cst_75 : f32 to vector<8x128xf32>
    %c0_i32_76 = arith.constant 0 : i32
    %184 = arith.index_cast %c0_i32_76 : i32 to index
    %c0_77 = arith.constant 0 : index
    %c0_78 = arith.constant 0 : index
    %185 = vector.load %arg12[%184, %c0_77, %c0_78] : memref<8x8x128xf32, #tpu.memory_space<vmem>>, vector<1x8x128xf32>
    %186 = vector.shape_cast %185 : vector<1x8x128xf32> to vector<8x128xf32>
    %187 = arith.truncf %183 : vector<8x128xf32> to vector<8x128xbf16>
    %cst_79 = arith.constant dense<0.000000e+00> : vector<8x128xf32>
    %188 = tpu.matmul %187, %173, %cst_79 {dimension_numbers = #tpu.dot_dimension_numbers<[1], [0], [0], [1], [0, 0, 1, 1], [], []>} : vector<8x128xbf16>, vector<128x128xbf16>, vector<8x128xf32> -> vector<8x128xf32>
    %189 = arith.addf %186, %188 : vector<8x128xf32>
    %190 = math.tanh %189 : vector<8x128xf32>
    %191 = vector.broadcast %c0_i32_76 : i32 to vector<8x1xi32>
    %192 = arith.cmpi sgt, %0, %191 : vector<8x1xi32>
    %cst_80 = arith.constant 0.000000e+00 : f32
    %193 = vector.shape_cast %192 : vector<8x1xi1> to vector<8x1xi1>
    %194 = vector.broadcast %193 : vector<8x1xi1> to vector<8x128xi1>
    %195 = vector.broadcast %cst_80 : f32 to vector<8x128xf32>
    %196 = arith.select %194, %190, %195 : vector<8x128xi1>, vector<8x128xf32>
    %197 = arith.index_cast %c0_i32_76 : i32 to index
    %c0_81 = arith.constant 0 : index
    %c0_82 = arith.constant 0 : index
    %198 = vector.load %arg12[%197, %c0_81, %c0_82] : memref<8x8x128xf32, #tpu.memory_space<vmem>>, vector<1x8x128xf32>
    %199 = vector.shape_cast %198 : vector<1x8x128xf32> to vector<8x128xf32>
    %200 = vector.shape_cast %196 : vector<8x128xf32> to vector<1x8x128xf32>
    tpu.vector_store %arg12[%197, %c0_81, %c0_82], %200 {strides = array<i32>} : memref<8x8x128xf32, #tpu.memory_space<vmem>>, vector<1x8x128xf32>,
    %201 = vector.shape_cast %192 : vector<8x1xi1> to vector<8x1xi1>
    %202 = vector.broadcast %201 : vector<8x1xi1> to vector<8x128xi1>
    %203 = arith.select %202, %190, %183 : vector<8x128xi1>, vector<8x128xf32>
    %c1_i32_83 = arith.constant 1 : i32
    %204 = arith.index_cast %c1_i32_83 : i32 to index
    %c0_84 = arith.constant 0 : index
    %c0_85 = arith.constant 0 : index
    %205 = vector.load %arg12[%204, %c0_84, %c0_85] : memref<8x8x128xf32, #tpu.memory_space<vmem>>, vector<1x8x128xf32>
    %206 = vector.shape_cast %205 : vector<1x8x128xf32> to vector<8x128xf32>
    %207 = arith.truncf %203 : vector<8x128xf32> to vector<8x128xbf16>
    %cst_86 = arith.constant dense<0.000000e+00> : vector<8x128xf32>
    %208 = tpu.matmul %207, %173, %cst_86 {dimension_numbers = #tpu.dot_dimension_numbers<[1], [0], [0], [1], [0, 0, 1, 1], [], []>} : vector<8x128xbf16>, vector<128x128xbf16>, vector<8x128xf32> -> vector<8x128xf32>
    %209 = arith.addf %206, %208 : vector<8x128xf32>
    %210 = math.tanh %209 : vector<8x128xf32>
    %211 = vector.broadcast %c1_i32_83 : i32 to vector<8x1xi32>
    %212 = arith.cmpi sgt, %0, %211 : vector<8x1xi32>
    %cst_87 = arith.constant 0.000000e+00 : f32
    %213 = vector.shape_cast %212 : vector<8x1xi1> to vector<8x1xi1>
    %214 = vector.broadcast %213 : vector<8x1xi1> to vector<8x128xi1>
    %215 = vector.broadcast %cst_87 : f32 to vector<8x128xf32>
    %216 = arith.select %214, %210, %215 : vector<8x128xi1>, vector<8x128xf32>
    %217 = arith.index_cast %c1_i32_83 : i32 to index
    %c0_88 = arith.constant 0 : index
    %c0_89 = arith.constant 0 : index
    %218 = vector.load %arg12[%217, %c0_88, %c0_89] : memref<8x8x128xf32, #tpu.memory_space<vmem>>, vector<1x8x128xf32>
    %219 = vector.shape_cast %218 : vector<1x8x128xf32> to vector<8x128xf32>
    %220 = vector.shape_cast %216 : vector<8x128xf32> to vector<1x8x128xf32>
    tpu.vector_store %arg12[%217, %c0_88, %c0_89], %220 {strides = array<i32>} : memref<8x8x128xf32, #tpu.memory_space<vmem>>, vector<1x8x128xf32>,
    %221 = vector.shape_cast %212 : vector<8x1xi1> to vector<8x1xi1>
    %222 = vector.broadcast %221 : vector<8x1xi1> to vector<8x128xi1>
    %223 = arith.select %222, %210, %203 : vector<8x128xi1>, vector<8x128xf32>
    %c2_i32_90 = arith.constant 2 : i32
    %224 = arith.index_cast %c2_i32_90 : i32 to index
    %c0_91 = arith.constant 0 : index
    %c0_92 = arith.constant 0 : index
    %225 = vector.load %arg12[%224, %c0_91, %c0_92] : memref<8x8x128xf32, #tpu.memory_space<vmem>>, vector<1x8x128xf32>
    %226 = vector.shape_cast %225 : vector<1x8x128xf32> to vector<8x128xf32>
    %227 = arith.truncf %223 : vector<8x128xf32> to vector<8x128xbf16>
    %cst_93 = arith.constant dense<0.000000e+00> : vector<8x128xf32>
    %228 = tpu.matmul %227, %173, %cst_93 {dimension_numbers = #tpu.dot_dimension_numbers<[1], [0], [0], [1], [0, 0, 1, 1], [], []>} : vector<8x128xbf16>, vector<128x128xbf16>, vector<8x128xf32> -> vector<8x128xf32>
    %229 = arith.addf %226, %228 : vector<8x128xf32>
    %230 = math.tanh %229 : vector<8x128xf32>
    %231 = vector.broadcast %c2_i32_90 : i32 to vector<8x1xi32>
    %232 = arith.cmpi sgt, %0, %231 : vector<8x1xi32>
    %cst_94 = arith.constant 0.000000e+00 : f32
    %233 = vector.shape_cast %232 : vector<8x1xi1> to vector<8x1xi1>
    %234 = vector.broadcast %233 : vector<8x1xi1> to vector<8x128xi1>
    %235 = vector.broadcast %cst_94 : f32 to vector<8x128xf32>
    %236 = arith.select %234, %230, %235 : vector<8x128xi1>, vector<8x128xf32>
    %237 = arith.index_cast %c2_i32_90 : i32 to index
    %c0_95 = arith.constant 0 : index
    %c0_96 = arith.constant 0 : index
    %238 = vector.load %arg12[%237, %c0_95, %c0_96] : memref<8x8x128xf32, #tpu.memory_space<vmem>>, vector<1x8x128xf32>
    %239 = vector.shape_cast %238 : vector<1x8x128xf32> to vector<8x128xf32>
    %240 = vector.shape_cast %236 : vector<8x128xf32> to vector<1x8x128xf32>
    tpu.vector_store %arg12[%237, %c0_95, %c0_96], %240 {strides = array<i32>} : memref<8x8x128xf32, #tpu.memory_space<vmem>>, vector<1x8x128xf32>,
    %241 = vector.shape_cast %232 : vector<8x1xi1> to vector<8x1xi1>
    %242 = vector.broadcast %241 : vector<8x1xi1> to vector<8x128xi1>
    %243 = arith.select %242, %230, %223 : vector<8x128xi1>, vector<8x128xf32>
    %c3_i32_97 = arith.constant 3 : i32
    %244 = arith.index_cast %c3_i32_97 : i32 to index
    %c0_98 = arith.constant 0 : index
    %c0_99 = arith.constant 0 : index
    %245 = vector.load %arg12[%244, %c0_98, %c0_99] : memref<8x8x128xf32, #tpu.memory_space<vmem>>, vector<1x8x128xf32>
    %246 = vector.shape_cast %245 : vector<1x8x128xf32> to vector<8x128xf32>
    %247 = arith.truncf %243 : vector<8x128xf32> to vector<8x128xbf16>
    %cst_100 = arith.constant dense<0.000000e+00> : vector<8x128xf32>
    %248 = tpu.matmul %247, %173, %cst_100 {dimension_numbers = #tpu.dot_dimension_numbers<[1], [0], [0], [1], [0, 0, 1, 1], [], []>} : vector<8x128xbf16>, vector<128x128xbf16>, vector<8x128xf32> -> vector<8x128xf32>
    %249 = arith.addf %246, %248 : vector<8x128xf32>
    %250 = math.tanh %249 : vector<8x128xf32>
    %251 = vector.broadcast %c3_i32_97 : i32 to vector<8x1xi32>
    %252 = arith.cmpi sgt, %0, %251 : vector<8x1xi32>
    %cst_101 = arith.constant 0.000000e+00 : f32
    %253 = vector.shape_cast %252 : vector<8x1xi1> to vector<8x1xi1>
    %254 = vector.broadcast %253 : vector<8x1xi1> to vector<8x128xi1>
    %255 = vector.broadcast %cst_101 : f32 to vector<8x128xf32>
    %256 = arith.select %254, %250, %255 : vector<8x128xi1>, vector<8x128xf32>
    %257 = arith.index_cast %c3_i32_97 : i32 to index
    %c0_102 = arith.constant 0 : index
    %c0_103 = arith.constant 0 : index
    %258 = vector.load %arg12[%257, %c0_102, %c0_103] : memref<8x8x128xf32, #tpu.memory_space<vmem>>, vector<1x8x128xf32>
    %259 = vector.shape_cast %258 : vector<1x8x128xf32> to vector<8x128xf32>
    %260 = vector.shape_cast %256 : vector<8x128xf32> to vector<1x8x128xf32>
    tpu.vector_store %arg12[%257, %c0_102, %c0_103], %260 {strides = array<i32>} : memref<8x8x128xf32, #tpu.memory_space<vmem>>, vector<1x8x128xf32>,
    %261 = vector.shape_cast %252 : vector<8x1xi1> to vector<8x1xi1>
    %262 = vector.broadcast %261 : vector<8x1xi1> to vector<8x128xi1>
    %263 = arith.select %262, %250, %243 : vector<8x128xi1>, vector<8x128xf32>
    %c4_i32_104 = arith.constant 4 : i32
    %264 = arith.index_cast %c4_i32_104 : i32 to index
    %c0_105 = arith.constant 0 : index
    %c0_106 = arith.constant 0 : index
    %265 = vector.load %arg12[%264, %c0_105, %c0_106] : memref<8x8x128xf32, #tpu.memory_space<vmem>>, vector<1x8x128xf32>
    %266 = vector.shape_cast %265 : vector<1x8x128xf32> to vector<8x128xf32>
    %267 = arith.truncf %263 : vector<8x128xf32> to vector<8x128xbf16>
    %cst_107 = arith.constant dense<0.000000e+00> : vector<8x128xf32>
    %268 = tpu.matmul %267, %173, %cst_107 {dimension_numbers = #tpu.dot_dimension_numbers<[1], [0], [0], [1], [0, 0, 1, 1], [], []>} : vector<8x128xbf16>, vector<128x128xbf16>, vector<8x128xf32> -> vector<8x128xf32>
    %269 = arith.addf %266, %268 : vector<8x128xf32>
    %270 = math.tanh %269 : vector<8x128xf32>
    %271 = vector.broadcast %c4_i32_104 : i32 to vector<8x1xi32>
    %272 = arith.cmpi sgt, %0, %271 : vector<8x1xi32>
    %cst_108 = arith.constant 0.000000e+00 : f32
    %273 = vector.shape_cast %272 : vector<8x1xi1> to vector<8x1xi1>
    %274 = vector.broadcast %273 : vector<8x1xi1> to vector<8x128xi1>
    %275 = vector.broadcast %cst_108 : f32 to vector<8x128xf32>
    %276 = arith.select %274, %270, %275 : vector<8x128xi1>, vector<8x128xf32>
    %277 = arith.index_cast %c4_i32_104 : i32 to index
    %c0_109 = arith.constant 0 : index
    %c0_110 = arith.constant 0 : index
    %278 = vector.load %arg12[%277, %c0_109, %c0_110] : memref<8x8x128xf32, #tpu.memory_space<vmem>>, vector<1x8x128xf32>
    %279 = vector.shape_cast %278 : vector<1x8x128xf32> to vector<8x128xf32>
    %280 = vector.shape_cast %276 : vector<8x128xf32> to vector<1x8x128xf32>
    tpu.vector_store %arg12[%277, %c0_109, %c0_110], %280 {strides = array<i32>} : memref<8x8x128xf32, #tpu.memory_space<vmem>>, vector<1x8x128xf32>,
    %281 = vector.shape_cast %272 : vector<8x1xi1> to vector<8x1xi1>
    %282 = vector.broadcast %281 : vector<8x1xi1> to vector<8x128xi1>
    %283 = arith.select %282, %270, %263 : vector<8x128xi1>, vector<8x128xf32>
    %c5_i32_111 = arith.constant 5 : i32
    %284 = arith.index_cast %c5_i32_111 : i32 to index
    %c0_112 = arith.constant 0 : index
    %c0_113 = arith.constant 0 : index
    %285 = vector.load %arg12[%284, %c0_112, %c0_113] : memref<8x8x128xf32, #tpu.memory_space<vmem>>, vector<1x8x128xf32>
    %286 = vector.shape_cast %285 : vector<1x8x128xf32> to vector<8x128xf32>
    %287 = arith.truncf %283 : vector<8x128xf32> to vector<8x128xbf16>
    %cst_114 = arith.constant dense<0.000000e+00> : vector<8x128xf32>
    %288 = tpu.matmul %287, %173, %cst_114 {dimension_numbers = #tpu.dot_dimension_numbers<[1], [0], [0], [1], [0, 0, 1, 1], [], []>} : vector<8x128xbf16>, vector<128x128xbf16>, vector<8x128xf32> -> vector<8x128xf32>
    %289 = arith.addf %286, %288 : vector<8x128xf32>
    %290 = math.tanh %289 : vector<8x128xf32>
    %291 = vector.broadcast %c5_i32_111 : i32 to vector<8x1xi32>
    %292 = arith.cmpi sgt, %0, %291 : vector<8x1xi32>
    %cst_115 = arith.constant 0.000000e+00 : f32
    %293 = vector.shape_cast %292 : vector<8x1xi1> to vector<8x1xi1>
    %294 = vector.broadcast %293 : vector<8x1xi1> to vector<8x128xi1>
    %295 = vector.broadcast %cst_115 : f32 to vector<8x128xf32>
    %296 = arith.select %294, %290, %295 : vector<8x128xi1>, vector<8x128xf32>
    %297 = arith.index_cast %c5_i32_111 : i32 to index
    %c0_116 = arith.constant 0 : index
    %c0_117 = arith.constant 0 : index
    %298 = vector.load %arg12[%297, %c0_116, %c0_117] : memref<8x8x128xf32, #tpu.memory_space<vmem>>, vector<1x8x128xf32>
    %299 = vector.shape_cast %298 : vector<1x8x128xf32> to vector<8x128xf32>
    %300 = vector.shape_cast %296 : vector<8x128xf32> to vector<1x8x128xf32>
    tpu.vector_store %arg12[%297, %c0_116, %c0_117], %300 {strides = array<i32>} : memref<8x8x128xf32, #tpu.memory_space<vmem>>, vector<1x8x128xf32>,
    %301 = vector.shape_cast %292 : vector<8x1xi1> to vector<8x1xi1>
    %302 = vector.broadcast %301 : vector<8x1xi1> to vector<8x128xi1>
    %303 = arith.select %302, %290, %283 : vector<8x128xi1>, vector<8x128xf32>
    %c6_i32_118 = arith.constant 6 : i32
    %304 = arith.index_cast %c6_i32_118 : i32 to index
    %c0_119 = arith.constant 0 : index
    %c0_120 = arith.constant 0 : index
    %305 = vector.load %arg12[%304, %c0_119, %c0_120] : memref<8x8x128xf32, #tpu.memory_space<vmem>>, vector<1x8x128xf32>
    %306 = vector.shape_cast %305 : vector<1x8x128xf32> to vector<8x128xf32>
    %307 = arith.truncf %303 : vector<8x128xf32> to vector<8x128xbf16>
    %cst_121 = arith.constant dense<0.000000e+00> : vector<8x128xf32>
    %308 = tpu.matmul %307, %173, %cst_121 {dimension_numbers = #tpu.dot_dimension_numbers<[1], [0], [0], [1], [0, 0, 1, 1], [], []>} : vector<8x128xbf16>, vector<128x128xbf16>, vector<8x128xf32> -> vector<8x128xf32>
    %309 = arith.addf %306, %308 : vector<8x128xf32>
    %310 = math.tanh %309 : vector<8x128xf32>
    %311 = vector.broadcast %c6_i32_118 : i32 to vector<8x1xi32>
    %312 = arith.cmpi sgt, %0, %311 : vector<8x1xi32>
    %cst_122 = arith.constant 0.000000e+00 : f32
    %313 = vector.shape_cast %312 : vector<8x1xi1> to vector<8x1xi1>
    %314 = vector.broadcast %313 : vector<8x1xi1> to vector<8x128xi1>
    %315 = vector.broadcast %cst_122 : f32 to vector<8x128xf32>
    %316 = arith.select %314, %310, %315 : vector<8x128xi1>, vector<8x128xf32>
    %317 = arith.index_cast %c6_i32_118 : i32 to index
    %c0_123 = arith.constant 0 : index
    %c0_124 = arith.constant 0 : index
    %318 = vector.load %arg12[%317, %c0_123, %c0_124] : memref<8x8x128xf32, #tpu.memory_space<vmem>>, vector<1x8x128xf32>
    %319 = vector.shape_cast %318 : vector<1x8x128xf32> to vector<8x128xf32>
    %320 = vector.shape_cast %316 : vector<8x128xf32> to vector<1x8x128xf32>
    tpu.vector_store %arg12[%317, %c0_123, %c0_124], %320 {strides = array<i32>} : memref<8x8x128xf32, #tpu.memory_space<vmem>>, vector<1x8x128xf32>,
    %321 = vector.shape_cast %312 : vector<8x1xi1> to vector<8x1xi1>
    %322 = vector.broadcast %321 : vector<8x1xi1> to vector<8x128xi1>
    %323 = arith.select %322, %310, %303 : vector<8x128xi1>, vector<8x128xf32>
    %c7_i32_125 = arith.constant 7 : i32
    %324 = arith.index_cast %c7_i32_125 : i32 to index
    %c0_126 = arith.constant 0 : index
    %c0_127 = arith.constant 0 : index
    %325 = vector.load %arg12[%324, %c0_126, %c0_127] : memref<8x8x128xf32, #tpu.memory_space<vmem>>, vector<1x8x128xf32>
    %326 = vector.shape_cast %325 : vector<1x8x128xf32> to vector<8x128xf32>
    %327 = arith.truncf %323 : vector<8x128xf32> to vector<8x128xbf16>
    %cst_128 = arith.constant dense<0.000000e+00> : vector<8x128xf32>
    %328 = tpu.matmul %327, %173, %cst_128 {dimension_numbers = #tpu.dot_dimension_numbers<[1], [0], [0], [1], [0, 0, 1, 1], [], []>} : vector<8x128xbf16>, vector<128x128xbf16>, vector<8x128xf32> -> vector<8x128xf32>
    %329 = arith.addf %326, %328 : vector<8x128xf32>
    %330 = math.tanh %329 : vector<8x128xf32>
    %331 = vector.broadcast %c7_i32_125 : i32 to vector<8x1xi32>
    %332 = arith.cmpi sgt, %0, %331 : vector<8x1xi32>
    %cst_129 = arith.constant 0.000000e+00 : f32
    %333 = vector.shape_cast %332 : vector<8x1xi1> to vector<8x1xi1>
    %334 = vector.broadcast %333 : vector<8x1xi1> to vector<8x128xi1>
    %335 = vector.broadcast %cst_129 : f32 to vector<8x128xf32>
    %336 = arith.select %334, %330, %335 : vector<8x128xi1>, vector<8x128xf32>
    %337 = arith.index_cast %c7_i32_125 : i32 to index
    %c0_130 = arith.constant 0 : index
    %c0_131 = arith.constant 0 : index
    %338 = vector.load %arg12[%337, %c0_130, %c0_131] : memref<8x8x128xf32, #tpu.memory_space<vmem>>, vector<1x8x128xf32>
    %339 = vector.shape_cast %338 : vector<1x8x128xf32> to vector<8x128xf32>
    %340 = vector.shape_cast %336 : vector<8x128xf32> to vector<1x8x128xf32>
    tpu.vector_store %arg12[%337, %c0_130, %c0_131], %340 {strides = array<i32>} : memref<8x8x128xf32, #tpu.memory_space<vmem>>, vector<1x8x128xf32>,
    %341 = vector.shape_cast %332 : vector<8x1xi1> to vector<8x1xi1>
    %342 = vector.broadcast %341 : vector<8x1xi1> to vector<8x128xi1>
    %343 = arith.select %342, %330, %323 : vector<8x128xi1>, vector<8x128xf32>
    %c8_i32_132 = arith.constant 8 : i32
    %c0_133 = arith.constant 0 : index
    %c0_134 = arith.constant 0 : index
    %c0_135 = arith.constant 0 : index
    %344 = vector.load %arg12[%c0_133, %c0_134, %c0_135] : memref<8x8x128xf32, #tpu.memory_space<vmem>>, vector<8x8x128xf32>
    %345 = vector.shape_cast %344 : vector<8x8x128xf32> to vector<64x128xf32>
    %346 = arith.truncf %345 : vector<64x128xf32> to vector<64x128xbf16>
    %c0_136 = arith.constant 0 : index
    %c0_137 = arith.constant 0 : index
    %347 = vector.load %arg9[%c0_136, %c0_137] : memref<128x128xbf16, #tpu.memory_space<vmem>>, vector<128x128xbf16>
    %cst_138 = arith.constant dense<0.000000e+00> : vector<64x128xf32>
    %348 = tpu.matmul %346, %347, %cst_138 {dimension_numbers = #tpu.dot_dimension_numbers<[1], [0], [0], [1], [0, 0, 1, 1], [], []>} : vector<64x128xbf16>, vector<128x128xbf16>, vector<64x128xf32> -> vector<64x128xf32>
    %c0_139 = arith.constant 0 : index
    %c0_140 = arith.constant 0 : index
    %349 = vector.load %arg10[%c0_139, %c0_140] : memref<1x128xf32, #tpu.memory_space<vmem>>, vector<1x128xf32>
    %350 = vector.broadcast %349 : vector<1x128xf32> to vector<64x128xf32>
    %351 = arith.addf %348, %350 : vector<64x128xf32>
    %352 = arith.negf %351 : vector<64x128xf32>
    %353 = math.exp %352 : vector<64x128xf32>
    %cst_141 = arith.constant 1.000000e+00 : f32
    %354 = vector.broadcast %cst_141 : f32 to vector<64x128xf32>
    %355 = arith.addf %354, %353 : vector<64x128xf32>
    %356 = arith.divf %354, %355 : vector<64x128xf32>
    %357 = vector.shape_cast %356 : vector<64x128xf32> to vector<8x8x128xf32>
    %c0_142 = arith.constant 0 : index
    %c0_143 = arith.constant 0 : index
    %c0_144 = arith.constant 0 : index
    %358 = vector.load %arg11[%c0_142, %c0_143, %c0_144] : memref<8x8x128xf32, #tpu.memory_space<vmem>>, vector<8x8x128xf32>
    tpu.vector_store %arg11[%c0_142, %c0_143, %c0_144], %357 {strides = array<i32>} : memref<8x8x128xf32, #tpu.memory_space<vmem>>, vector<8x8x128xf32>,
    return
  }
  func.func @transform_0(%arg0: i32) -> (i32, i32, i32) {
    %c0_i32 = arith.constant 0 : i32
    %c0_i32_0 = arith.constant 0 : i32
    %c0_i32_1 = arith.constant 0 : i32
    return %c0_i32, %arg0, %c0_i32_0 : i32, i32, i32
  }
  func.func @transform_1(%arg0: i32) -> (i32, i32) {
    %c0_i32 = arith.constant 0 : i32
    %c0_i32_0 = arith.constant 0 : i32
    return %arg0, %c0_i32 : i32, i32
  }
  func.func @transform_2(%arg0: i32) -> (i32, i32) {
    %c0_i32 = arith.constant 0 : i32
    %c0_i32_0 = arith.constant 0 : i32
    %c0_i32_1 = arith.constant 0 : i32
    return %c0_i32, %c0_i32_0 : i32, i32
  }
  func.func @transform_3(%arg0: i32) -> (i32, i32) {
    %c0_i32 = arith.constant 0 : i32
    %c0_i32_0 = arith.constant 0 : i32
    %c0_i32_1 = arith.constant 0 : i32
    return %c0_i32, %c0_i32_0 : i32, i32
  }
  func.func @transform_4(%arg0: i32) -> (i32, i32) {
    %c0_i32 = arith.constant 0 : i32
    %c0_i32_0 = arith.constant 0 : i32
    %c0_i32_1 = arith.constant 0 : i32
    return %c0_i32, %c0_i32_0 : i32, i32
  }
  func.func @transform_5(%arg0: i32) -> (i32, i32) {
    %c0_i32 = arith.constant 0 : i32
    %c0_i32_0 = arith.constant 0 : i32
    %c0_i32_1 = arith.constant 0 : i32
    return %c0_i32, %c0_i32_0 : i32, i32
  }
  func.func @transform_6(%arg0: i32) -> (i32, i32) {
    %c0_i32 = arith.constant 0 : i32
    %c0_i32_0 = arith.constant 0 : i32
    %c0_i32_1 = arith.constant 0 : i32
    return %c0_i32, %c0_i32_0 : i32, i32
  }
  func.func @transform_7(%arg0: i32) -> (i32, i32) {
    %c0_i32 = arith.constant 0 : i32
    %c0_i32_0 = arith.constant 0 : i32
    %c0_i32_1 = arith.constant 0 : i32
    return %c0_i32, %c0_i32_0 : i32, i32
  }
  func.func @transform_8(%arg0: i32) -> (i32, i32) {
    %c0_i32 = arith.constant 0 : i32
    %c0_i32_0 = arith.constant 0 : i32
    %c0_i32_1 = arith.constant 0 : i32
    return %c0_i32, %c0_i32_0 : i32, i32
  }
  func.func @transform_9(%arg0: i32) -> (i32, i32) {
    %c0_i32 = arith.constant 0 : i32
    %c0_i32_0 = arith.constant 0 : i32
    %c0_i32_1 = arith.constant 0 : i32
    return %c0_i32, %c0_i32_0 : i32, i32
  }
  func.func @transform_10(%arg0: i32) -> (i32, i32, i32) {
    %c0_i32 = arith.constant 0 : i32
    %c0_i32_0 = arith.constant 0 : i32
    %c0_i32_1 = arith.constant 0 : i32
    return %c0_i32, %arg0, %c0_i32_0 : i32, i32, i32
  }
}

</mosaic_0001>

<llo_original>
// kernel: tpu_custom_call.1
$region0: #{tpu_custom_call.1}
  #allocation0 [shape = 'u32[]', space=smem, size = 0x4, offset = 0x4, fixed_abs, tag = 'smem constant byte address 0x4 - core index']
  #allocation1 [shape = 'u32[144,128]{1,0:T(1,128)}', space=vmem, size = 0x12000, scoped, tag = 'internal scratch']
  #allocation2 [shape = 'f32[8,8,128]{2,1,0:T(8,128)}', space=vmem, size = 0x8000, scoped, tag = 'scratch operand']
  %s0 = inlined_call_operand.hbm [shape: bf16[8,8,128], index: 0, kind: input, shape index: {}]
  %s1 = inlined_call_operand.vmem [shape: s32[8,1], index: 1, kind: input, shape index: {}]
  %s2 = inlined_call_operand.hbm [shape: bf16[128,128], index: 2, kind: input, shape index: {}]
  %s3 = inlined_call_operand.hbm [shape: bf16[128,128], index: 3, kind: input, shape index: {}]
  %s4 = inlined_call_operand.vmem [shape: f32[1,128], index: 4, kind: input, shape index: {}]
  %s5 = inlined_call_operand.hbm [shape: bf16[128,128], index: 5, kind: input, shape index: {}]
  %s6 = inlined_call_operand.hbm [shape: bf16[128,128], index: 6, kind: input, shape index: {}]
  %s7 = inlined_call_operand.vmem [shape: f32[1,128], index: 7, kind: input, shape index: {}]
  %s8 = inlined_call_operand.hbm [shape: bf16[128,128], index: 8, kind: input, shape index: {}]
  %s9 = inlined_call_operand.vmem [shape: f32[1,128], index: 9, kind: input, shape index: {}]
  %s10 = inlined_call_operand.hbm [shape: f32[8,8,128], index: 10, kind: output, shape index: {}]
  %s11 = sld [smem:[#allocation0]]
  $region74: #{tpu_custom_call.1} parent=0
    _
  %s13 = ssub.s32 1, %s11
  %s14 = scalar_select 0, %s13, %s11
  $region1: #{tpu_custom_call.1} parent=0
    #allocation3 [shape = 'u8[16384]{0}', space=vmem, size = 0x4000, scoped, tag = 'input window, operand 0, single buffered']
    #allocation4 [shape = 's32[1]{0}', space=sflag, size = 0x4, scoped, tag = 'scoped memory for tpu_custom_call.1']
    #allocation5 [shape = 's32[1]{0}', space=sflag, size = 0x4, scoped, tag = 'scoped memory for tpu_custom_call.1']
    #allocation6 [shape = 'u8[32768]{0}', space=vmem, size = 0x8000, scoped, tag = 'input window, operand 2, single buffered']
    #allocation7 [shape = 's32[1]{0}', space=sflag, size = 0x4, scoped, tag = 'scoped memory for tpu_custom_call.1']
    #allocation8 [shape = 'u8[32768]{0}', space=vmem, size = 0x8000, scoped, tag = 'input window, operand 3, single buffered']
    #allocation9 [shape = 'u8[32768]{0}', space=vmem, size = 0x8000, scoped, tag = 'input window, operand 5, single buffered']
    #allocation10 [shape = 's32[1]{0}', space=sflag, size = 0x4, scoped, tag = 'scoped memory for tpu_custom_call.1']
    #allocation11 [shape = 'u8[32768]{0}', space=vmem, size = 0x8000, scoped, tag = 'input window, operand 6, single buffered']
    #allocation12 [shape = 'u8[32768]{0}', space=vmem, size = 0x8000, scoped, tag = 'input window, operand 8, single buffered']
    #allocation13 [shape = 's32[1]{0}', space=sflag, size = 0x4, scoped, tag = 'scoped memory for tpu_custom_call.1']
    #allocation14 [shape = 'u8[32768]{0}', space=vmem, size = 0x8000, scoped, tag = 'output window, operand 0, single buffered']
    %15 = vsyncpa [#allocation4], 0
    %16 = vsyncpa [#allocation7], 0
    %17 = vsyncpa [#allocation10], 0
    %18 = vsyncpa [#allocation13], 0
    %19 = vsyncpa [#allocation5], 0
    // Predicated region
    $region2: #{tpu_custom_call.1} parent=1 // pred_check
      _
    $region3: #{tpu_custom_call.1} parent=1 // pred_check_branch
      %21 = sbr.rel (0) target = $region5
    $region4: #{tpu_custom_call.1} parent=1 // pred_region
      %s23 = ssub.s32 512, 512
      %24 = vsyncadd [#allocation4], %s23
      %s25 = sshll.u32 [#allocation3], 4
      %s26 = int_to_ptr.vmem [resolvable:$true] %s25
      %31 = dma.hbm_to_vmem [thread:$0]  %s0, 512, %s26, [#allocation4], 64, 64, 4
    $region5: #{tpu_custom_call.1} parent=1 // pred_fallthru
      _
    // Predicated region
    $region6: #{tpu_custom_call.1} parent=1 // pred_check
      _
    $region7: #{tpu_custom_call.1} parent=1 // pred_check_branch
      %33 = sbr.rel (0) target = $region9
    $region8: #{tpu_custom_call.1} parent=1 // pred_region
      _
    $region9: #{tpu_custom_call.1} parent=1 // pred_fallthru
      _
    // Predicated region
    $region10: #{tpu_custom_call.1} parent=1 // pred_check
      _
    $region11: #{tpu_custom_call.1} parent=1 // pred_check_branch
      %35 = sbr.rel (0) target = $region13
    $region12: #{tpu_custom_call.1} parent=1 // pred_region
      %s37 = ssub.s32 1024, 1024
      %38 = vsyncadd [#allocation7], %s37
      %s39 = sshll.u32 [#allocation6], 4
      %s40 = int_to_ptr.vmem [resolvable:$true] %s39
      %45 = dma.hbm_to_vmem [thread:$0]  %s2, 1024, %s40, [#allocation7], 64, 64, 4
    $region13: #{tpu_custom_call.1} parent=1 // pred_fallthru
      _
    // Predicated region
    $region14: #{tpu_custom_call.1} parent=1 // pred_check
      _
    $region15: #{tpu_custom_call.1} parent=1 // pred_check_branch
      %47 = sbr.rel (0) target = $region17
    $region16: #{tpu_custom_call.1} parent=1 // pred_region
      %s49 = ssub.s32 1024, 1024
      %50 = vsyncadd [#allocation7], %s49
      %s51 = sshll.u32 [#allocation8], 4
      %s52 = int_to_ptr.vmem [resolvable:$true] %s51
      %57 = dma.hbm_to_vmem [thread:$0]  %s3, 1024, %s52, [#allocation7], 64, 64, 4
    $region17: #{tpu_custom_call.1} parent=1 // pred_fallthru
      _
    // Predicated region
    $region18: #{tpu_custom_call.1} parent=1 // pred_check
      _
    $region19: #{tpu_custom_call.1} parent=1 // pred_check_branch
      %59 = sbr.rel (0) target = $region21
    $region20: #{tpu_custom_call.1} parent=1 // pred_region
      _
    $region21: #{tpu_custom_call.1} parent=1 // pred_fallthru
      _
    // Predicated region
    $region22: #{tpu_custom_call.1} parent=1 // pred_check
      _
    $region23: #{tpu_custom_call.1} parent=1 // pred_check_branch
      %61 = sbr.rel (0) target = $region25
    $region24: #{tpu_custom_call.1} parent=1 // pred_region
      %s63 = ssub.s32 1024, 1024
      %64 = vsyncadd [#allocation10], %s63
      %s65 = sshll.u32 [#allocation9], 4
      %s66 = int_to_ptr.vmem [resolvable:$true] %s65
      %71 = dma.hbm_to_vmem [thread:$0]  %s5, 1024, %s66, [#allocation10], 64, 64, 4
    $region25: #{tpu_custom_call.1} parent=1 // pred_fallthru
      _
    // Predicated region
    $region26: #{tpu_custom_call.1} parent=1 // pred_check
      _
    $region27: #{tpu_custom_call.1} parent=1 // pred_check_branch
      %73 = sbr.rel (0) target = $region29
    $region28: #{tpu_custom_call.1} parent=1 // pred_region
      %s75 = ssub.s32 1024, 1024
      %76 = vsyncadd [#allocation10], %s75
      %s77 = sshll.u32 [#allocation11], 4
      %s78 = int_to_ptr.vmem [resolvable:$true] %s77
      %83 = dma.hbm_to_vmem [thread:$0]  %s6, 1024, %s78, [#allocation10], 64, 64, 4
    $region29: #{tpu_custom_call.1} parent=1 // pred_fallthru
      _
    // Predicated region
    $region30: #{tpu_custom_call.1} parent=1 // pred_check
      _
    $region31: #{tpu_custom_call.1} parent=1 // pred_check_branch
      %85 = sbr.rel (0) target = $region33
    $region32: #{tpu_custom_call.1} parent=1 // pred_region
      _
    $region33: #{tpu_custom_call.1} parent=1 // pred_fallthru
      _
    // Predicated region
    $region34: #{tpu_custom_call.1} parent=1 // pred_check
      _
    $region35: #{tpu_custom_call.1} parent=1 // pred_check_branch
      %87 = sbr.rel (0) target = $region37
    $region36: #{tpu_custom_call.1} parent=1 // pred_region
      %s89 = ssub.s32 1024, 1024
      %90 = vsyncadd [#allocation13], %s89
      %s91 = sshll.u32 [#allocation12], 4
      %s92 = int_to_ptr.vmem [resolvable:$true] %s91
      %97 = dma.hbm_to_vmem [thread:$0]  %s8, 1024, %s92, [#allocation13], 64, 64, 4
    $region37: #{tpu_custom_call.1} parent=1 // pred_fallthru
      _
    // Predicated region
    $region38: #{tpu_custom_call.1} parent=1 // pred_check
      _
    $region39: #{tpu_custom_call.1} parent=1 // pred_check_branch
      %99 = sbr.rel (0) target = $region41
    $region40: #{tpu_custom_call.1} parent=1 // pred_region
      _
    $region41: #{tpu_custom_call.1} parent=1 // pred_fallthru
      _
    // Predicated region
    $region42: #{tpu_custom_call.1} parent=1 // pred_check
      _
    $region43: #{tpu_custom_call.1} parent=1 // pred_check_branch
      %101 = sbr.rel (0) target = $region45
    $region44: #{tpu_custom_call.1} parent=1 // pred_region
      %102 = dma.done [#allocation4], 512
    $region45: #{tpu_custom_call.1} parent=1 // pred_fallthru
      _
    // Predicated region
    $region46: #{tpu_custom_call.1} parent=1 // pred_check
      _
    $region47: #{tpu_custom_call.1} parent=1 // pred_check_branch
      %104 = sbr.rel (0) target = $region49
    $region48: #{tpu_custom_call.1} parent=1 // pred_region
      %105 = dma.done [#allocation7], 1024
    $region49: #{tpu_custom_call.1} parent=1 // pred_fallthru
      _
    // Predicated region
    $region50: #{tpu_custom_call.1} parent=1 // pred_check
      _
    $region51: #{tpu_custom_call.1} parent=1 // pred_check_branch
      %107 = sbr.rel (0) target = $region53
    $region52: #{tpu_custom_call.1} parent=1 // pred_region
      %108 = dma.done [#allocation7], 1024
    $region53: #{tpu_custom_call.1} parent=1 // pred_fallthru
      _
    // Predicated region
    $region54: #{tpu_custom_call.1} parent=1 // pred_check
      _
    $region55: #{tpu_custom_call.1} parent=1 // pred_check_branch
      %110 = sbr.rel (0) target = $region57
    $region56: #{tpu_custom_call.1} parent=1 // pred_region
      %111 = dma.done [#allocation10], 1024
    $region57: #{tpu_custom_call.1} parent=1 // pred_fallthru
      _
    // Predicated region
    $region58: #{tpu_custom_call.1} parent=1 // pred_check
      _
    $region59: #{tpu_custom_call.1} parent=1 // pred_check_branch
      %113 = sbr.rel (0) target = $region61
    $region60: #{tpu_custom_call.1} parent=1 // pred_region
      %114 = dma.done [#allocation10], 1024
    $region61: #{tpu_custom_call.1} parent=1 // pred_fallthru
      _
    // Predicated region
    $region62: #{tpu_custom_call.1} parent=1 // pred_check
      _
    $region63: #{tpu_custom_call.1} parent=1 // pred_check_branch
      %116 = sbr.rel (0) target = $region65
    $region64: #{tpu_custom_call.1} parent=1 // pred_region
      %117 = dma.done [#allocation13], 1024
    $region65: #{tpu_custom_call.1} parent=1 // pred_fallthru
      _
    %v119 = vld [vmem:[%s1] sm:$0xff]
    %v120 = vld [vmem:[#allocation6] sm:$0xf]
    %v121 = vld [vmem:[#allocation6 + $0x4] sm:$0xf]
    %v122 = vld [vmem:[#allocation6 + $0x8] sm:$0xf]
    %v123 = vld [vmem:[#allocation6 + $0xc] sm:$0xf]
    %v124 = vld [vmem:[#allocation6 + $0x10] sm:$0xf]
    %v125 = vld [vmem:[#allocation6 + $0x14] sm:$0xf]
    %v126 = vld [vmem:[#allocation6 + $0x18] sm:$0xf]
    %v127 = vld [vmem:[#allocation6 + $0x1c] sm:$0xf]
    %v128 = vld [vmem:[#allocation6 + $0x20] sm:$0xf]
    %v129 = vld [vmem:[#allocation6 + $0x24] sm:$0xf]
    %v130 = vld [vmem:[#allocation6 + $0x28] sm:$0xf]
    %v131 = vld [vmem:[#allocation6 + $0x2c] sm:$0xf]
    %v132 = vld [vmem:[#allocation6 + $0x30] sm:$0xf]
    %v133 = vld [vmem:[#allocation6 + $0x34] sm:$0xf]
    %v134 = vld [vmem:[#allocation6 + $0x38] sm:$0xf]
    %v135 = vld [vmem:[#allocation6 + $0x3c] sm:$0xf]
    %v136 = vld [vmem:[#allocation8] sm:$0xf]
    %v137 = vld [vmem:[#allocation8 + $0x4] sm:$0xf]
    %v138 = vld [vmem:[#allocation8 + $0x8] sm:$0xf]
    %v139 = vld [vmem:[#allocation8 + $0xc] sm:$0xf]
    %v140 = vld [vmem:[#allocation8 + $0x10] sm:$0xf]
    %v141 = vld [vmem:[#allocation8 + $0x14] sm:$0xf]
    %v142 = vld [vmem:[#allocation8 + $0x18] sm:$0xf]
    %v143 = vld [vmem:[#allocation8 + $0x1c] sm:$0xf]
    %v144 = vld [vmem:[#allocation8 + $0x20] sm:$0xf]
    %v145 = vld [vmem:[#allocation8 + $0x24] sm:$0xf]
    %v146 = vld [vmem:[#allocation8 + $0x28] sm:$0xf]
    %v147 = vld [vmem:[#allocation8 + $0x2c] sm:$0xf]
    %v148 = vld [vmem:[#allocation8 + $0x30] sm:$0xf]
    %v149 = vld [vmem:[#allocation8 + $0x34] sm:$0xf]
    %v150 = vld [vmem:[#allocation8 + $0x38] sm:$0xf]
    %v151 = vld [vmem:[#allocation8 + $0x3c] sm:$0xf]
    %v152 = vld [vmem:[%s4] sm:$0x1]
    %v153 = vld [vmem:[#allocation3] sm:$0xf]
    %v154 = vld [vmem:[#allocation3 + $0x4] sm:$0xf]
    %v155 = vld [vmem:[#allocation3 + $0x8] sm:$0xf]
    %v156 = vld [vmem:[#allocation3 + $0xc] sm:$0xf]
    %v157 = vld [vmem:[#allocation3 + $0x10] sm:$0xf]
    %v158 = vld [vmem:[#allocation3 + $0x14] sm:$0xf]
    %v159 = vld [vmem:[#allocation3 + $0x18] sm:$0xf]
    %v160 = vld [vmem:[#allocation3 + $0x1c] sm:$0xf]
    %v162 = vlaneseq
    %v163 = vshrl.u32 %v162, 7
    %v164 = vsub.s32 0, %v163
    %v165 = vrot.slane %v152, %v164
    %v175 = vunpack.c.l.b16 %v153
    %v176 = vunpack.c.l.b16 %v154
    %v177 = vunpack.c.l.b16 %v155
    %v178 = vunpack.c.l.b16 %v156
    %v179 = vunpack.c.l.b16 %v157
    %v180 = vunpack.c.l.b16 %v158
    %v181 = vunpack.c.l.b16 %v159
    %v182 = vunpack.c.l.b16 %v160
    %v183 = vpack.c.b16 %v176, %v175
    %v184 = vpack.c.b16 %v178, %v177
    %v185 = vpack.c.b16 %v180, %v179
    %v186 = vpack.c.b16 %v182, %v181
    %v207 = vunpack.c.l.b16 %v120
    %v208 = vunpack.c.l.b16 %v121
    %v209 = vunpack.c.l.b16 %v122
    %v210 = vunpack.c.l.b16 %v123
    %v211 = vunpack.c.l.b16 %v124
    %v212 = vunpack.c.l.b16 %v125
    %v213 = vunpack.c.l.b16 %v126
    %v214 = vunpack.c.l.b16 %v127
    %v215 = vunpack.c.l.b16 %v128
    %v216 = vunpack.c.l.b16 %v129
    %v217 = vunpack.c.l.b16 %v130
    %v218 = vunpack.c.l.b16 %v131
    %v219 = vunpack.c.l.b16 %v132
    %v220 = vunpack.c.l.b16 %v133
    %v221 = vunpack.c.l.b16 %v134
    %v222 = vunpack.c.l.b16 %v135
    %v223 = vpack.c.b16 %v208, %v207
    %v224 = vpack.c.b16 %v210, %v209
    %v225 = vpack.c.b16 %v212, %v211
    %v226 = vpack.c.b16 %v214, %v213
    %v227 = vpack.c.b16 %v216, %v215
    %v228 = vpack.c.b16 %v218, %v217
    %v229 = vpack.c.b16 %v220, %v219
    %v230 = vpack.c.b16 %v222, %v221
    %239 = vmatprep.subr.bf16.mxu0 0
    %240 = vmatpush1.bf16.msra.mxu0 %v223
    %241 = vmatprep.subr.bf16.mxu0 0
    %242 = vmatpush1.bf16.msra.mxu0 %v224
    %243 = vmatprep.subr.bf16.mxu0 0
    %244 = vmatpush1.bf16.msra.mxu0 %v225
    %245 = vmatprep.subr.bf16.mxu0 0
    %246 = vmatpush1.bf16.msra.mxu0 %v226
    %247 = vmatprep.subr.bf16.mxu0 0
    %248 = vmatpush1.bf16.msra.mxu0 %v227
    %249 = vmatprep.subr.bf16.mxu0 0
    %250 = vmatpush1.bf16.msra.mxu0 %v228
    %251 = vmatprep.subr.bf16.mxu0 0
    %252 = vmatpush1.bf16.msra.mxu0 %v229
    %253 = vmatprep.subr.bf16.mxu0 0
    %254 = vmatpush1.bf16.msra.mxu0 %v230
    %255 = vmatprep.subr.bf16.mxu0 0
    %256 = vmatpush1.bf16.msra.mxu0 0
    %257 = vmatprep.subr.bf16.mxu0 0
    %258 = vmatpush1.bf16.msra.mxu0 0
    %259 = vmatprep.subr.bf16.mxu0 0
    %260 = vmatpush1.bf16.msra.mxu0 0
    %261 = vmatprep.subr.bf16.mxu0 0
    %262 = vmatpush1.bf16.msra.mxu0 0
    %263 = vmatprep.subr.bf16.mxu0 0
    %264 = vmatpush1.bf16.msra.mxu0 0
    %265 = vmatprep.subr.bf16.mxu0 0
    %266 = vmatpush1.bf16.msra.mxu0 0
    %267 = vmatprep.subr.bf16.mxu0 0
    %268 = vmatpush1.bf16.msra.mxu0 0
    %269 = vmatprep.subr.bf16.mxu0 0
    %270 = vmatpush1.bf16.msra.mxu0 0
    %271 = vmatprep.mubr.bf16.mxu0 0
    %272 = vmatmul.mubr.bf16.gmra.mrb[0].mxu0 %v183
    %v273 = vpop.f32.mrb[0].mxu0
    %v274 = vadd.f32 %v165, %v273
    %v275 = vpop.f32.mrb[0].mxu0
    %v276 = vpop.f32.mrb[0].mxu0
    %v277 = vadd.f32 %v165, %v276
    %v278 = vpop.f32.mrb[0].mxu0
    %279 = vmatprep.mubr.bf16.mxu0 0
    %280 = vmatmul.mubr.bf16.gmra.mrb[0].mxu0 %v184
    %v281 = vpop.f32.mrb[0].mxu0
    %v282 = vadd.f32 %v165, %v281
    %v283 = vpop.f32.mrb[0].mxu0
    %v284 = vpop.f32.mrb[0].mxu0
    %v285 = vadd.f32 %v165, %v284
    %v286 = vpop.f32.mrb[0].mxu0
    %287 = vmatprep.mubr.bf16.mxu0 0
    %288 = vmatmul.mubr.bf16.gmra.mrb[0].mxu0 %v185
    %v289 = vpop.f32.mrb[0].mxu0
    %v290 = vadd.f32 %v165, %v289
    %v291 = vpop.f32.mrb[0].mxu0
    %v292 = vpop.f32.mrb[0].mxu0
    %v293 = vadd.f32 %v165, %v292
    %v294 = vpop.f32.mrb[0].mxu0
    %295 = vmatprep.mubr.bf16.mxu0 0
    %296 = vmatmul.mubr.bf16.gmra.mrb[0].mxu0 %v186
    %v297 = vpop.f32.mrb[0].mxu0
    %v298 = vadd.f32 %v165, %v297
    %v299 = vpop.f32.mrb[0].mxu0
    %v300 = vpop.f32.mrb[0].mxu0
    %v301 = vadd.f32 %v165, %v300
    %v302 = vpop.f32.mrb[0].mxu0
    %303 = vdwg.mxu0
    %304 = vst [vmem:[#allocation2] sm:$0xff] %v274
    %305 = vst [vmem:[#allocation2 + $0x8] sm:$0xff] %v277
    %306 = vst [vmem:[#allocation2 + $0x10] sm:$0xff] %v282
    %307 = vst [vmem:[#allocation2 + $0x18] sm:$0xff] %v285
    %308 = vst [vmem:[#allocation2 + $0x20] sm:$0xff] %v290
    %309 = vst [vmem:[#allocation2 + $0x28] sm:$0xff] %v293
    %310 = vst [vmem:[#allocation2 + $0x30] sm:$0xff] %v298
    %311 = vst [vmem:[#allocation2 + $0x38] sm:$0xff] %v301
    %v312 = vld [vmem:[#allocation2] sm:$0xff]
    %v329 = vunpack.c.l.b16 %v136
    %v330 = vunpack.c.l.b16 %v137
    %v331 = vunpack.c.l.b16 %v138
    %v332 = vunpack.c.l.b16 %v139
    %v333 = vunpack.c.l.b16 %v140
    %v334 = vunpack.c.l.b16 %v141
    %v335 = vunpack.c.l.b16 %v142
    %v336 = vunpack.c.l.b16 %v143
    %v337 = vunpack.c.l.b16 %v144
    %v338 = vunpack.c.l.b16 %v145
    %v339 = vunpack.c.l.b16 %v146
    %v340 = vunpack.c.l.b16 %v147
    %v341 = vunpack.c.l.b16 %v148
    %v342 = vunpack.c.l.b16 %v149
    %v343 = vunpack.c.l.b16 %v150
    %v344 = vunpack.c.l.b16 %v151
    %v345 = vpack.c.b16 %v330, %v329
    %v346 = vpack.c.b16 %v332, %v331
    %v347 = vpack.c.b16 %v334, %v333
    %v348 = vpack.c.b16 %v336, %v335
    %v349 = vpack.c.b16 %v338, %v337
    %v350 = vpack.c.b16 %v340, %v339
    %v351 = vpack.c.b16 %v342, %v341
    %v352 = vpack.c.b16 %v344, %v343
    %361 = vmatprep.subr.bf16.mxu0 0
    %362 = vmatpush1.bf16.msra.mxu0 %v345
    %363 = vmatprep.subr.bf16.mxu0 0
    %364 = vmatpush1.bf16.msra.mxu0 %v346
    %365 = vmatprep.subr.bf16.mxu0 0
    %366 = vmatpush1.bf16.msra.mxu0 %v347
    %367 = vmatprep.subr.bf16.mxu0 0
    %368 = vmatpush1.bf16.msra.mxu0 %v348
    %369 = vmatprep.subr.bf16.mxu0 0
    %370 = vmatpush1.bf16.msra.mxu0 %v349
    %371 = vmatprep.subr.bf16.mxu0 0
    %372 = vmatpush1.bf16.msra.mxu0 %v350
    %373 = vmatprep.subr.bf16.mxu0 0
    %374 = vmatpush1.bf16.msra.mxu0 %v351
    %375 = vmatprep.subr.bf16.mxu0 0
    %376 = vmatpush1.bf16.msra.mxu0 %v352
    %377 = vmatprep.subr.bf16.mxu0 0
    %378 = vmatpush1.bf16.msra.mxu0 0
    %379 = vmatprep.subr.bf16.mxu0 0
    %380 = vmatpush1.bf16.msra.mxu0 0
    %381 = vmatprep.subr.bf16.mxu0 0
    %382 = vmatpush1.bf16.msra.mxu0 0
    %383 = vmatprep.subr.bf16.mxu0 0
    %384 = vmatpush1.bf16.msra.mxu0 0
    %385 = vmatprep.subr.bf16.mxu0 0
    %386 = vmatpush1.bf16.msra.mxu0 0
    %387 = vmatprep.subr.bf16.mxu0 0
    %388 = vmatpush1.bf16.msra.mxu0 0
    %389 = vmatprep.subr.bf16.mxu0 0
    %390 = vmatpush1.bf16.msra.mxu0 0
    %391 = vmatprep.subr.bf16.mxu0 0
    %392 = vmatpush1.bf16.msra.mxu0 0
    %393 = vmatprep.mubr.bf16.mxu0 0
    %394 = vmatmul.mubr.bf16.gmra.mrb[0].mxu0 0
    %v395 = vpop.f32.mrb[0].mxu0
    %v396 = vadd.f32 0.0, %v395
    %v397 = vpop.f32.mrb[0].mxu0
    %v398 = vpop.f32.mrb[0].mxu0
    %v399 = vpop.f32.mrb[0].mxu0
    %400 = vdwg.mxu0
    %v401 = vadd.f32 %v312, %v396
    %v402 = vtanh.pop %v401
    %vm403 = vcmp.gt.s32.totalorder %v119, 0
    %v404 = vsel %vm403, 1, 0
    %405 = vset.pattern.permute.xlu0 0
    %406 = vperm.xlu0 %405, %v404
    %v407 = vpop.permute.xlu0 %406
    %vm408 = vcmp.eq.s32.totalorder %v407, 1
    %v409 = vsel %vm408, %v402, 0.0
    %410 = vst [vmem:[#allocation2] sm:$0xff] %v409
    %s411 = scalar_lea.vmem [#allocation2], 8
    %v412 = vld [vmem:[%s411] sm:$0xff]
    %v413 = vpack.c.bf16 %v409, %v409
    %414 = vmatprep.subr.bf16.mxu0 0
    %415 = vmatpush1.bf16.msra.mxu0 %v345
    %416 = vmatprep.subr.bf16.mxu0 0
    %417 = vmatpush1.bf16.msra.mxu0 %v346
    %418 = vmatprep.subr.bf16.mxu0 0
    %419 = vmatpush1.bf16.msra.mxu0 %v347
    %420 = vmatprep.subr.bf16.mxu0 0
    %421 = vmatpush1.bf16.msra.mxu0 %v348
    %422 = vmatprep.subr.bf16.mxu0 0
    %423 = vmatpush1.bf16.msra.mxu0 %v349
    %424 = vmatprep.subr.bf16.mxu0 0
    %425 = vmatpush1.bf16.msra.mxu0 %v350
    %426 = vmatprep.subr.bf16.mxu0 0
    %427 = vmatpush1.bf16.msra.mxu0 %v351
    %428 = vmatprep.subr.bf16.mxu0 0
    %429 = vmatpush1.bf16.msra.mxu0 %v352
    %430 = vmatprep.subr.bf16.mxu0 0
    %431 = vmatpush1.bf16.msra.mxu0 0
    %432 = vmatprep.subr.bf16.mxu0 0
    %433 = vmatpush1.bf16.msra.mxu0 0
    %434 = vmatprep.subr.bf16.mxu0 0
    %435 = vmatpush1.bf16.msra.mxu0 0
    %436 = vmatprep.subr.bf16.mxu0 0
    %437 = vmatpush1.bf16.msra.mxu0 0
    %438 = vmatprep.subr.bf16.mxu0 0
    %439 = vmatpush1.bf16.msra.mxu0 0
    %440 = vmatprep.subr.bf16.mxu0 0
    %441 = vmatpush1.bf16.msra.mxu0 0
    %442 = vmatprep.subr.bf16.mxu0 0
    %443 = vmatpush1.bf16.msra.mxu0 0
    %444 = vmatprep.subr.bf16.mxu0 0
    %445 = vmatpush1.bf16.msra.mxu0 0
    %446 = vmatprep.mubr.bf16.mxu0 0
    %447 = vmatmul.mubr.bf16.gmra.mrb[0].mxu0 %v413
    %v448 = vpop.f32.mrb[0].mxu0
    %v449 = vadd.f32 0.0, %v448
    %v450 = vpop.f32.mrb[0].mxu0
    %v451 = vpop.f32.mrb[0].mxu0
    %v452 = vpop.f32.mrb[0].mxu0
    %453 = vdwg.mxu0
    %v454 = vadd.f32 %v412, %v449
    %v455 = vtanh.pop %v454
    %vm456 = vcmp.gt.s32.totalorder %v119, 1
    %v457 = vsel %vm456, 1, 0
    %458 = vset.pattern.permute.xlu0 0
    %459 = vperm.xlu0 %458, %v457
    %v460 = vpop.permute.xlu0 %459
    %vm461 = vcmp.eq.s32.totalorder %v460, 1
    %v462 = vsel %vm461, %v455, 0.0
    %463 = vst [vmem:[%s411] sm:$0xff] %v462
    %v464 = vsel %vm461, %v455, %v409
    %s465 = scalar_lea.vmem [#allocation2], 16
    %v466 = vld [vmem:[%s465] sm:$0xff]
    %v467 = vpack.c.bf16 %v464, %v464
    %468 = vmatprep.subr.bf16.mxu0 0
    %469 = vmatpush1.bf16.msra.mxu0 %v345
    %470 = vmatprep.subr.bf16.mxu0 0
    %471 = vmatpush1.bf16.msra.mxu0 %v346
    %472 = vmatprep.subr.bf16.mxu0 0
    %473 = vmatpush1.bf16.msra.mxu0 %v347
    %474 = vmatprep.subr.bf16.mxu0 0
    %475 = vmatpush1.bf16.msra.mxu0 %v348
    %476 = vmatprep.subr.bf16.mxu0 0
    %477 = vmatpush1.bf16.msra.mxu0 %v349
    %478 = vmatprep.subr.bf16.mxu0 0
    %479 = vmatpush1.bf16.msra.mxu0 %v350
    %480 = vmatprep.subr.bf16.mxu0 0
    %481 = vmatpush1.bf16.msra.mxu0 %v351
    %482 = vmatprep.subr.bf16.mxu0 0
    %483 = vmatpush1.bf16.msra.mxu0 %v352
    %484 = vmatprep.subr.bf16.mxu0 0
    %485 = vmatpush1.bf16.msra.mxu0 0
    %486 = vmatprep.subr.bf16.mxu0 0
    %487 = vmatpush1.bf16.msra.mxu0 0
    %488 = vmatprep.subr.bf16.mxu0 0
    %489 = vmatpush1.bf16.msra.mxu0 0
    %490 = vmatprep.subr.bf16.mxu0 0
    %491 = vmatpush1.bf16.msra.mxu0 0
    %492 = vmatprep.subr.bf16.mxu0 0
    %493 = vmatpush1.bf16.msra.mxu0 0
    %494 = vmatprep.subr.bf16.mxu0 0
    %495 = vmatpush1.bf16.msra.mxu0 0
    %496 = vmatprep.subr.bf16.mxu0 0
    %497 = vmatpush1.bf16.msra.mxu0 0
    %498 = vmatprep.subr.bf16.mxu0 0
    %499 = vmatpush1.bf16.msra.mxu0 0
    %500 = vmatprep.mubr.bf16.mxu0 0
    %501 = vmatmul.mubr.bf16.gmra.mrb[0].mxu0 %v467
    %v502 = vpop.f32.mrb[0].mxu0
    %v503 = vadd.f32 0.0, %v502
    %v504 = vpop.f32.mrb[0].mxu0
    %v505 = vpop.f32.mrb[0].mxu0
    %v506 = vpop.f32.mrb[0].mxu0
    %507 = vdwg.mxu0
    %v508 = vadd.f32 %v466, %v503
    %v509 = vtanh.pop %v508
    %vm510 = vcmp.gt.s32.totalorder %v119, 2
    %v511 = vsel %vm510, 1, 0
    %512 = vset.pattern.permute.xlu0 0
    %513 = vperm.xlu0 %512, %v511
    %v514 = vpop.permute.xlu0 %513
    %vm515 = vcmp.eq.s32.totalorder %v514, 1
    %v516 = vsel %vm515, %v509, 0.0
    %517 = vst [vmem:[%s465] sm:$0xff] %v516
    %v518 = vsel %vm515, %v509, %v464
    %s519 = scalar_lea.vmem [#allocation2], 24
    %v520 = vld [vmem:[%s519] sm:$0xff]
    %v521 = vpack.c.bf16 %v518, %v518
    %522 = vmatprep.subr.bf16.mxu0 0
    %523 = vmatpush1.bf16.msra.mxu0 %v345
    %524 = vmatprep.subr.bf16.mxu0 0
    %525 = vmatpush1.bf16.msra.mxu0 %v346
    %526 = vmatprep.subr.bf16.mxu0 0
    %527 = vmatpush1.bf16.msra.mxu0 %v347
    %528 = vmatprep.subr.bf16.mxu0 0
    %529 = vmatpush1.bf16.msra.mxu0 %v348
    %530 = vmatprep.subr.bf16.mxu0 0
    %531 = vmatpush1.bf16.msra.mxu0 %v349
    %532 = vmatprep.subr.bf16.mxu0 0
    %533 = vmatpush1.bf16.msra.mxu0 %v350
    %534 = vmatprep.subr.bf16.mxu0 0
    %535 = vmatpush1.bf16.msra.mxu0 %v351
    %536 = vmatprep.subr.bf16.mxu0 0
    %537 = vmatpush1.bf16.msra.mxu0 %v352
    %538 = vmatprep.subr.bf16.mxu0 0
    %539 = vmatpush1.bf16.msra.mxu0 0
    %540 = vmatprep.subr.bf16.mxu0 0
    %541 = vmatpush1.bf16.msra.mxu0 0
    %542 = vmatprep.subr.bf16.mxu0 0
    %543 = vmatpush1.bf16.msra.mxu0 0
    %544 = vmatprep.subr.bf16.mxu0 0
    %545 = vmatpush1.bf16.msra.mxu0 0
    %546 = vmatprep.subr.bf16.mxu0 0
    %547 = vmatpush1.bf16.msra.mxu0 0
    %548 = vmatprep.subr.bf16.mxu0 0
    %549 = vmatpush1.bf16.msra.mxu0 0
    %550 = vmatprep.subr.bf16.mxu0 0
    %551 = vmatpush1.bf16.msra.mxu0 0
    %552 = vmatprep.subr.bf16.mxu0 0
    %553 = vmatpush1.bf16.msra.mxu0 0
    %554 = vmatprep.mubr.bf16.mxu0 0
    %555 = vmatmul.mubr.bf16.gmra.mrb[0].mxu0 %v521
    %v556 = vpop.f32.mrb[0].mxu0
    %v557 = vadd.f32 0.0, %v556
    %v558 = vpop.f32.mrb[0].mxu0
    %v559 = vpop.f32.mrb[0].mxu0
    %v560 = vpop.f32.mrb[0].mxu0
    %561 = vdwg.mxu0
    %v562 = vadd.f32 %v520, %v557
    %v563 = vtanh.pop %v562
    %vm564 = vcmp.gt.s32.totalorder %v119, 3
    %v565 = vsel %vm564, 1, 0
    %566 = vset.pattern.permute.xlu0 0
    %567 = vperm.xlu0 %566, %v565
    %v568 = vpop.permute.xlu0 %567
    %vm569 = vcmp.eq.s32.totalorder %v568, 1
    %v570 = vsel %vm569, %v563, 0.0
    %571 = vst [vmem:[%s519] sm:$0xff] %v570
    %v572 = vsel %vm569, %v563, %v518
    %s573 = scalar_lea.vmem [#allocation2], 32
    %v574 = vld [vmem:[%s573] sm:$0xff]
    %v575 = vpack.c.bf16 %v572, %v572
    %576 = vmatprep.subr.bf16.mxu0 0
    %577 = vmatpush1.bf16.msra.mxu0 %v345
    %578 = vmatprep.subr.bf16.mxu0 0
    %579 = vmatpush1.bf16.msra.mxu0 %v346
    %580 = vmatprep.subr.bf16.mxu0 0
    %581 = vmatpush1.bf16.msra.mxu0 %v347
    %582 = vmatprep.subr.bf16.mxu0 0
    %583 = vmatpush1.bf16.msra.mxu0 %v348
    %584 = vmatprep.subr.bf16.mxu0 0
    %585 = vmatpush1.bf16.msra.mxu0 %v349
    %586 = vmatprep.subr.bf16.mxu0 0
    %587 = vmatpush1.bf16.msra.mxu0 %v350
    %588 = vmatprep.subr.bf16.mxu0 0
    %589 = vmatpush1.bf16.msra.mxu0 %v351
    %590 = vmatprep.subr.bf16.mxu0 0
    %591 = vmatpush1.bf16.msra.mxu0 %v352
    %592 = vmatprep.subr.bf16.mxu0 0
    %593 = vmatpush1.bf16.msra.mxu0 0
    %594 = vmatprep.subr.bf16.mxu0 0
    %595 = vmatpush1.bf16.msra.mxu0 0
    %596 = vmatprep.subr.bf16.mxu0 0
    %597 = vmatpush1.bf16.msra.mxu0 0
    %598 = vmatprep.subr.bf16.mxu0 0
    %599 = vmatpush1.bf16.msra.mxu0 0
    %600 = vmatprep.subr.bf16.mxu0 0
    %601 = vmatpush1.bf16.msra.mxu0 0
    %602 = vmatprep.subr.bf16.mxu0 0
    %603 = vmatpush1.bf16.msra.mxu0 0
    %604 = vmatprep.subr.bf16.mxu0 0
    %605 = vmatpush1.bf16.msra.mxu0 0
    %606 = vmatprep.subr.bf16.mxu0 0
    %607 = vmatpush1.bf16.msra.mxu0 0
    %608 = vmatprep.mubr.bf16.mxu0 0
    %609 = vmatmul.mubr.bf16.gmra.mrb[0].mxu0 %v575
    %v610 = vpop.f32.mrb[0].mxu0
    %v611 = vadd.f32 0.0, %v610
    %v612 = vpop.f32.mrb[0].mxu0
    %v613 = vpop.f32.mrb[0].mxu0
    %v614 = vpop.f32.mrb[0].mxu0
    %615 = vdwg.mxu0
    %v616 = vadd.f32 %v574, %v611
    %v617 = vtanh.pop %v616
    %vm618 = vcmp.gt.s32.totalorder %v119, 4
    %v619 = vsel %vm618, 1, 0
    %620 = vset.pattern.permute.xlu0 0
    %621 = vperm.xlu0 %620, %v619
    %v622 = vpop.permute.xlu0 %621
    %vm623 = vcmp.eq.s32.totalorder %v622, 1
    %v624 = vsel %vm623, %v617, 0.0
    %625 = vst [vmem:[%s573] sm:$0xff] %v624
    %v626 = vsel %vm623, %v617, %v572
    %s627 = scalar_lea.vmem [#allocation2], 40
    %v628 = vld [vmem:[%s627] sm:$0xff]
    %v629 = vpack.c.bf16 %v626, %v626
    %630 = vmatprep.subr.bf16.mxu0 0
    %631 = vmatpush1.bf16.msra.mxu0 %v345
    %632 = vmatprep.subr.bf16.mxu0 0
    %633 = vmatpush1.bf16.msra.mxu0 %v346
    %634 = vmatprep.subr.bf16.mxu0 0
    %635 = vmatpush1.bf16.msra.mxu0 %v347
    %636 = vmatprep.subr.bf16.mxu0 0
    %637 = vmatpush1.bf16.msra.mxu0 %v348
    %638 = vmatprep.subr.bf16.mxu0 0
    %639 = vmatpush1.bf16.msra.mxu0 %v349
    %640 = vmatprep.subr.bf16.mxu0 0
    %641 = vmatpush1.bf16.msra.mxu0 %v350
    %642 = vmatprep.subr.bf16.mxu0 0
    %643 = vmatpush1.bf16.msra.mxu0 %v351
    %644 = vmatprep.subr.bf16.mxu0 0
    %645 = vmatpush1.bf16.msra.mxu0 %v352
    %646 = vmatprep.subr.bf16.mxu0 0
    %647 = vmatpush1.bf16.msra.mxu0 0
    %648 = vmatprep.subr.bf16.mxu0 0
    %649 = vmatpush1.bf16.msra.mxu0 0
    %650 = vmatprep.subr.bf16.mxu0 0
    %651 = vmatpush1.bf16.msra.mxu0 0
    %652 = vmatprep.subr.bf16.mxu0 0
    %653 = vmatpush1.bf16.msra.mxu0 0
    %654 = vmatprep.subr.bf16.mxu0 0
    %655 = vmatpush1.bf16.msra.mxu0 0
    %656 = vmatprep.subr.bf16.mxu0 0
    %657 = vmatpush1.bf16.msra.mxu0 0
    %658 = vmatprep.subr.bf16.mxu0 0
    %659 = vmatpush1.bf16.msra.mxu0 0
    %660 = vmatprep.subr.bf16.mxu0 0
    %661 = vmatpush1.bf16.msra.mxu0 0
    %662 = vmatprep.mubr.bf16.mxu0 0
    %663 = vmatmul.mubr.bf16.gmra.mrb[0].mxu0 %v629
    %v664 = vpop.f32.mrb[0].mxu0
    %v665 = vadd.f32 0.0, %v664
    %v666 = vpop.f32.mrb[0].mxu0
    %v667 = vpop.f32.mrb[0].mxu0
    %v668 = vpop.f32.mrb[0].mxu0
    %669 = vdwg.mxu0
    %v670 = vadd.f32 %v628, %v665
    %v671 = vtanh.pop %v670
    %vm672 = vcmp.gt.s32.totalorder %v119, 5
    %v673 = vsel %vm672, 1, 0
    %674 = vset.pattern.permute.xlu0 0
    %675 = vperm.xlu0 %674, %v673
    %v676 = vpop.permute.xlu0 %675
    %vm677 = vcmp.eq.s32.totalorder %v676, 1
    %v678 = vsel %vm677, %v671, 0.0
    %679 = vst [vmem:[%s627] sm:$0xff] %v678
    %v680 = vsel %vm677, %v671, %v626
    %s681 = scalar_lea.vmem [#allocation2], 48
    %v682 = vld [vmem:[%s681] sm:$0xff]
    %v683 = vpack.c.bf16 %v680, %v680
    %684 = vmatprep.subr.bf16.mxu0 0
    %685 = vmatpush1.bf16.msra.mxu0 %v345
    %686 = vmatprep.subr.bf16.mxu0 0
    %687 = vmatpush1.bf16.msra.mxu0 %v346
    %688 = vmatprep.subr.bf16.mxu0 0
    %689 = vmatpush1.bf16.msra.mxu0 %v347
    %690 = vmatprep.subr.bf16.mxu0 0
    %691 = vmatpush1.bf16.msra.mxu0 %v348
    %692 = vmatprep.subr.bf16.mxu0 0
    %693 = vmatpush1.bf16.msra.mxu0 %v349
    %694 = vmatprep.subr.bf16.mxu0 0
    %695 = vmatpush1.bf16.msra.mxu0 %v350
    %696 = vmatprep.subr.bf16.mxu0 0
    %697 = vmatpush1.bf16.msra.mxu0 %v351
    %698 = vmatprep.subr.bf16.mxu0 0
    %699 = vmatpush1.bf16.msra.mxu0 %v352
    %700 = vmatprep.subr.bf16.mxu0 0
    %701 = vmatpush1.bf16.msra.mxu0 0
    %702 = vmatprep.subr.bf16.mxu0 0
    %703 = vmatpush1.bf16.msra.mxu0 0
    %704 = vmatprep.subr.bf16.mxu0 0
    %705 = vmatpush1.bf16.msra.mxu0 0
    %706 = vmatprep.subr.bf16.mxu0 0
    %707 = vmatpush1.bf16.msra.mxu0 0
    %708 = vmatprep.subr.bf16.mxu0 0
    %709 = vmatpush1.bf16.msra.mxu0 0
    %710 = vmatprep.subr.bf16.mxu0 0
    %711 = vmatpush1.bf16.msra.mxu0 0
    %712 = vmatprep.subr.bf16.mxu0 0
    %713 = vmatpush1.bf16.msra.mxu0 0
    %714 = vmatprep.subr.bf16.mxu0 0
    %715 = vmatpush1.bf16.msra.mxu0 0
    %716 = vmatprep.mubr.bf16.mxu0 0
    %717 = vmatmul.mubr.bf16.gmra.mrb[0].mxu0 %v683
    %v718 = vpop.f32.mrb[0].mxu0
    %v719 = vadd.f32 0.0, %v718
    %v720 = vpop.f32.mrb[0].mxu0
    %v721 = vpop.f32.mrb[0].mxu0
    %v722 = vpop.f32.mrb[0].mxu0
    %723 = vdwg.mxu0
    %v724 = vadd.f32 %v682, %v719
    %v725 = vtanh.pop %v724
    %vm726 = vcmp.gt.s32.totalorder %v119, 6
    %v727 = vsel %vm726, 1, 0
    %728 = vset.pattern.permute.xlu0 0
    %729 = vperm.xlu0 %728, %v727
    %v730 = vpop.permute.xlu0 %729
    %vm731 = vcmp.eq.s32.totalorder %v730, 1
    %v732 = vsel %vm731, %v725, 0.0
    %733 = vst [vmem:[%s681] sm:$0xff] %v732
    %v734 = vsel %vm731, %v725, %v680
    %s735 = scalar_lea.vmem [#allocation2], 56
    %v736 = vld [vmem:[%s735] sm:$0xff]
    %v737 = vpack.c.bf16 %v734, %v734
    %738 = vmatprep.subr.bf16.mxu0 0
    %739 = vmatpush1.bf16.msra.mxu0 %v345
    %740 = vmatprep.subr.bf16.mxu0 0
    %741 = vmatpush1.bf16.msra.mxu0 %v346
    %742 = vmatprep.subr.bf16.mxu0 0
    %743 = vmatpush1.bf16.msra.mxu0 %v347
    %744 = vmatprep.subr.bf16.mxu0 0
    %745 = vmatpush1.bf16.msra.mxu0 %v348
    %746 = vmatprep.subr.bf16.mxu0 0
    %747 = vmatpush1.bf16.msra.mxu0 %v349
    %748 = vmatprep.subr.bf16.mxu0 0
    %749 = vmatpush1.bf16.msra.mxu0 %v350
    %750 = vmatprep.subr.bf16.mxu0 0
    %751 = vmatpush1.bf16.msra.mxu0 %v351
    %752 = vmatprep.subr.bf16.mxu0 0
    %753 = vmatpush1.bf16.msra.mxu0 %v352
    %754 = vmatprep.subr.bf16.mxu0 0
    %755 = vmatpush1.bf16.msra.mxu0 0
    %756 = vmatprep.subr.bf16.mxu0 0
    %757 = vmatpush1.bf16.msra.mxu0 0
    %758 = vmatprep.subr.bf16.mxu0 0
    %759 = vmatpush1.bf16.msra.mxu0 0
    %760 = vmatprep.subr.bf16.mxu0 0
    %761 = vmatpush1.bf16.msra.mxu0 0
    %762 = vmatprep.subr.bf16.mxu0 0
    %763 = vmatpush1.bf16.msra.mxu0 0
    %764 = vmatprep.subr.bf16.mxu0 0
    %765 = vmatpush1.bf16.msra.mxu0 0
    %766 = vmatprep.subr.bf16.mxu0 0
    %767 = vmatpush1.bf16.msra.mxu0 0
    %768 = vmatprep.subr.bf16.mxu0 0
    %769 = vmatpush1.bf16.msra.mxu0 0
    %770 = vmatprep.mubr.bf16.mxu0 0
    %771 = vmatmul.mubr.bf16.gmra.mrb[0].mxu0 %v737
    %v772 = vpop.f32.mrb[0].mxu0
    %v773 = vadd.f32 0.0, %v772
    %v774 = vpop.f32.mrb[0].mxu0
    %v775 = vpop.f32.mrb[0].mxu0
    %v776 = vpop.f32.mrb[0].mxu0
    %777 = vdwg.mxu0
    %v778 = vadd.f32 %v736, %v773
    %v779 = vtanh.pop %v778
    %vm780 = vcmp.gt.s32.totalorder %v119, 7
    %v781 = vsel %vm780, 1, 0
    %782 = vset.pattern.permute.xlu0 0
    %783 = vperm.xlu0 %782, %v781
    %v784 = vpop.permute.xlu0 %783
    %vm785 = vcmp.eq.s32.totalorder %v784, 1
    %v786 = vsel %vm785, %v779, 0.0
    %787 = vst [vmem:[%s735] sm:$0xff] %v786
    %v788 = vld [vmem:[#allocation9] sm:$0xf]
    %v789 = vld [vmem:[#allocation9 + $0x4] sm:$0xf]
    %v790 = vld [vmem:[#allocation9 + $0x8] sm:$0xf]
    %v791 = vld [vmem:[#allocation9 + $0xc] sm:$0xf]
    %v792 = vld [vmem:[#allocation9 + $0x10] sm:$0xf]
    %v793 = vld [vmem:[#allocation9 + $0x14] sm:$0xf]
    %v794 = vld [vmem:[#allocation9 + $0x18] sm:$0xf]
    %v795 = vld [vmem:[#allocation9 + $0x1c] sm:$0xf]
    %v796 = vld [vmem:[#allocation9 + $0x20] sm:$0xf]
    %v797 = vld [vmem:[#allocation9 + $0x24] sm:$0xf]
    %v798 = vld [vmem:[#allocation9 + $0x28] sm:$0xf]
    %v799 = vld [vmem:[#allocation9 + $0x2c] sm:$0xf]
    %v800 = vld [vmem:[#allocation9 + $0x30] sm:$0xf]
    %v801 = vld [vmem:[#allocation9 + $0x34] sm:$0xf]
    %v802 = vld [vmem:[#allocation9 + $0x38] sm:$0xf]
    %v803 = vld [vmem:[#allocation9 + $0x3c] sm:$0xf]
    %v804 = vld [vmem:[#allocation11] sm:$0xf]
    %v805 = vld [vmem:[#allocation11 + $0x4] sm:$0xf]
    %v806 = vld [vmem:[#allocation11 + $0x8] sm:$0xf]
    %v807 = vld [vmem:[#allocation11 + $0xc] sm:$0xf]
    %v808 = vld [vmem:[#allocation11 + $0x10] sm:$0xf]
    %v809 = vld [vmem:[#allocation11 + $0x14] sm:$0xf]
    %v810 = vld [vmem:[#allocation11 + $0x18] sm:$0xf]
    %v811 = vld [vmem:[#allocation11 + $0x1c] sm:$0xf]
    %v812 = vld [vmem:[#allocation11 + $0x20] sm:$0xf]
    %v813 = vld [vmem:[#allocation11 + $0x24] sm:$0xf]
    %v814 = vld [vmem:[#allocation11 + $0x28] sm:$0xf]
    %v815 = vld [vmem:[#allocation11 + $0x2c] sm:$0xf]
    %v816 = vld [vmem:[#allocation11 + $0x30] sm:$0xf]
    %v817 = vld [vmem:[#allocation11 + $0x34] sm:$0xf]
    %v818 = vld [vmem:[#allocation11 + $0x38] sm:$0xf]
    %v819 = vld [vmem:[#allocation11 + $0x3c] sm:$0xf]
    %v820 = vld [vmem:[%s7] sm:$0x1]
    %v821 = vld [vmem:[#allocation2] sm:$0xff]
    %v822 = vld [vmem:[#allocation2 + $0x8] sm:$0xff]
    %v823 = vld [vmem:[#allocation2 + $0x10] sm:$0xff]
    %v824 = vld [vmem:[#allocation2 + $0x18] sm:$0xff]
    %v825 = vld [vmem:[#allocation2 + $0x20] sm:$0xff]
    %v826 = vld [vmem:[#allocation2 + $0x28] sm:$0xff]
    %v827 = vld [vmem:[#allocation2 + $0x30] sm:$0xff]
    %v828 = vld [vmem:[#allocation2 + $0x38] sm:$0xff]
    %v829 = vpack.c.bf16 %v821, %v821
    %v830 = vpack.c.bf16 %v822, %v822
    %v831 = vpack.c.bf16 %v823, %v823
    %v832 = vpack.c.bf16 %v824, %v824
    %v833 = vpack.c.bf16 %v825, %v825
    %v834 = vpack.c.bf16 %v826, %v826
    %v835 = vpack.c.bf16 %v827, %v827
    %v836 = vpack.c.bf16 %v828, %v828
    %v838 = vlaneseq
    %v839 = vshrl.u32 %v838, 7
    %v840 = vsub.s32 0, %v839
    %v841 = vrot.slane %v820, %v840
    %v851 = vunpack.c.l.b16 %v829
    %v852 = vunpack.c.l.b16 %v830
    %v853 = vunpack.c.l.b16 %v831
    %v854 = vunpack.c.l.b16 %v832
    %v855 = vunpack.c.l.b16 %v833
    %v856 = vunpack.c.l.b16 %v834
    %v857 = vunpack.c.l.b16 %v835
    %v858 = vunpack.c.l.b16 %v836
    %v859 = vpack.c.b16 %v852, %v851
    %v860 = vpack.c.b16 %v854, %v853
    %v861 = vpack.c.b16 %v856, %v855
    %v862 = vpack.c.b16 %v858, %v857
    %v883 = vunpack.c.l.b16 %v788
    %v884 = vunpack.c.l.b16 %v789
    %v885 = vunpack.c.l.b16 %v790
    %v886 = vunpack.c.l.b16 %v791
    %v887 = vunpack.c.l.b16 %v792
    %v888 = vunpack.c.l.b16 %v793
    %v889 = vunpack.c.l.b16 %v794
    %v890 = vunpack.c.l.b16 %v795
    %v891 = vunpack.c.l.b16 %v796
    %v892 = vunpack.c.l.b16 %v797
    %v893 = vunpack.c.l.b16 %v798
    %v894 = vunpack.c.l.b16 %v799
    %v895 = vunpack.c.l.b16 %v800
    %v896 = vunpack.c.l.b16 %v801
    %v897 = vunpack.c.l.b16 %v802
    %v898 = vunpack.c.l.b16 %v803
    %v899 = vpack.c.b16 %v884, %v883
    %v900 = vpack.c.b16 %v886, %v885
    %v901 = vpack.c.b16 %v888, %v887
    %v902 = vpack.c.b16 %v890, %v889
    %v903 = vpack.c.b16 %v892, %v891
    %v904 = vpack.c.b16 %v894, %v893
    %v905 = vpack.c.b16 %v896, %v895
    %v906 = vpack.c.b16 %v898, %v897
    %915 = vmatprep.subr.bf16.mxu0 0
    %916 = vmatpush1.bf16.msra.mxu0 %v899
    %917 = vmatprep.subr.bf16.mxu0 0
    %918 = vmatpush1.bf16.msra.mxu0 %v900
    %919 = vmatprep.subr.bf16.mxu0 0
    %920 = vmatpush1.bf16.msra.mxu0 %v901
    %921 = vmatprep.subr.bf16.mxu0 0
    %922 = vmatpush1.bf16.msra.mxu0 %v902
    %923 = vmatprep.subr.bf16.mxu0 0
    %924 = vmatpush1.bf16.msra.mxu0 %v903
    %925 = vmatprep.subr.bf16.mxu0 0
    %926 = vmatpush1.bf16.msra.mxu0 %v904
    %927 = vmatprep.subr.bf16.mxu0 0
    %928 = vmatpush1.bf16.msra.mxu0 %v905
    %929 = vmatprep.subr.bf16.mxu0 0
    %930 = vmatpush1.bf16.msra.mxu0 %v906
    %931 = vmatprep.subr.bf16.mxu0 0
    %932 = vmatpush1.bf16.msra.mxu0 0
    %933 = vmatprep.subr.bf16.mxu0 0
    %934 = vmatpush1.bf16.msra.mxu0 0
    %935 = vmatprep.subr.bf16.mxu0 0
    %936 = vmatpush1.bf16.msra.mxu0 0
    %937 = vmatprep.subr.bf16.mxu0 0
    %938 = vmatpush1.bf16.msra.mxu0 0
    %939 = vmatprep.subr.bf16.mxu0 0
    %940 = vmatpush1.bf16.msra.mxu0 0
    %941 = vmatprep.subr.bf16.mxu0 0
    %942 = vmatpush1.bf16.msra.mxu0 0
    %943 = vmatprep.subr.bf16.mxu0 0
    %944 = vmatpush1.bf16.msra.mxu0 0
    %945 = vmatprep.subr.bf16.mxu0 0
    %946 = vmatpush1.bf16.msra.mxu0 0
    %947 = vmatprep.mubr.bf16.mxu0 0
    %948 = vmatmul.mubr.bf16.gmra.mrb[0].mxu0 %v859
    %v949 = vpop.f32.mrb[0].mxu0
    %v950 = vadd.f32 %v841, %v949
    %v951 = vpop.f32.mrb[0].mxu0
    %v952 = vpop.f32.mrb[0].mxu0
    %v953 = vadd.f32 %v841, %v952
    %v954 = vpop.f32.mrb[0].mxu0
    %955 = vmatprep.mubr.bf16.mxu0 0
    %956 = vmatmul.mubr.bf16.gmra.mrb[0].mxu0 %v860
    %v957 = vpop.f32.mrb[0].mxu0
    %v958 = vadd.f32 %v841, %v957
    %v959 = vpop.f32.mrb[0].mxu0
    %v960 = vpop.f32.mrb[0].mxu0
    %v961 = vadd.f32 %v841, %v960
    %v962 = vpop.f32.mrb[0].mxu0
    %963 = vmatprep.mubr.bf16.mxu0 0
    %964 = vmatmul.mubr.bf16.gmra.mrb[0].mxu0 %v861
    %v965 = vpop.f32.mrb[0].mxu0
    %v966 = vadd.f32 %v841, %v965
    %v967 = vpop.f32.mrb[0].mxu0
    %v968 = vpop.f32.mrb[0].mxu0
    %v969 = vadd.f32 %v841, %v968
    %v970 = vpop.f32.mrb[0].mxu0
    %971 = vmatprep.mubr.bf16.mxu0 0
    %972 = vmatmul.mubr.bf16.gmra.mrb[0].mxu0 %v862
    %v973 = vpop.f32.mrb[0].mxu0
    %v974 = vadd.f32 %v841, %v973
    %v975 = vpop.f32.mrb[0].mxu0
    %v976 = vpop.f32.mrb[0].mxu0
    %v977 = vadd.f32 %v841, %v976
    %v978 = vpop.f32.mrb[0].mxu0
    %979 = vdwg.mxu0
    %980 = vst [vmem:[#allocation2] sm:$0xff] %v950
    %981 = vst [vmem:[#allocation2 + $0x8] sm:$0xff] %v953
    %982 = vst [vmem:[#allocation2 + $0x10] sm:$0xff] %v958
    %983 = vst [vmem:[#allocation2 + $0x18] sm:$0xff] %v961
    %984 = vst [vmem:[#allocation2 + $0x20] sm:$0xff] %v966
    %985 = vst [vmem:[#allocation2 + $0x28] sm:$0xff] %v969
    %986 = vst [vmem:[#allocation2 + $0x30] sm:$0xff] %v974
    %987 = vst [vmem:[#allocation2 + $0x38] sm:$0xff] %v977
    %v988 = vld [vmem:[#allocation2] sm:$0xff]
    %v1005 = vunpack.c.l.b16 %v804
    %v1006 = vunpack.c.l.b16 %v805
    %v1007 = vunpack.c.l.b16 %v806
    %v1008 = vunpack.c.l.b16 %v807
    %v1009 = vunpack.c.l.b16 %v808
    %v1010 = vunpack.c.l.b16 %v809
    %v1011 = vunpack.c.l.b16 %v810
    %v1012 = vunpack.c.l.b16 %v811
    %v1013 = vunpack.c.l.b16 %v812
    %v1014 = vunpack.c.l.b16 %v813
    %v1015 = vunpack.c.l.b16 %v814
    %v1016 = vunpack.c.l.b16 %v815
    %v1017 = vunpack.c.l.b16 %v816
    %v1018 = vunpack.c.l.b16 %v817
    %v1019 = vunpack.c.l.b16 %v818
    %v1020 = vunpack.c.l.b16 %v819
    %v1021 = vpack.c.b16 %v1006, %v1005
    %v1022 = vpack.c.b16 %v1008, %v1007
    %v1023 = vpack.c.b16 %v1010, %v1009
    %v1024 = vpack.c.b16 %v1012, %v1011
    %v1025 = vpack.c.b16 %v1014, %v1013
    %v1026 = vpack.c.b16 %v1016, %v1015
    %v1027 = vpack.c.b16 %v1018, %v1017
    %v1028 = vpack.c.b16 %v1020, %v1019
    %1037 = vmatprep.subr.bf16.mxu0 0
    %1038 = vmatpush1.bf16.msra.mxu0 %v1021
    %1039 = vmatprep.subr.bf16.mxu0 0
    %1040 = vmatpush1.bf16.msra.mxu0 %v1022
    %1041 = vmatprep.subr.bf16.mxu0 0
    %1042 = vmatpush1.bf16.msra.mxu0 %v1023
    %1043 = vmatprep.subr.bf16.mxu0 0
    %1044 = vmatpush1.bf16.msra.mxu0 %v1024
    %1045 = vmatprep.subr.bf16.mxu0 0
    %1046 = vmatpush1.bf16.msra.mxu0 %v1025
    %1047 = vmatprep.subr.bf16.mxu0 0
    %1048 = vmatpush1.bf16.msra.mxu0 %v1026
    %1049 = vmatprep.subr.bf16.mxu0 0
    %1050 = vmatpush1.bf16.msra.mxu0 %v1027
    %1051 = vmatprep.subr.bf16.mxu0 0
    %1052 = vmatpush1.bf16.msra.mxu0 %v1028
    %1053 = vmatprep.subr.bf16.mxu0 0
    %1054 = vmatpush1.bf16.msra.mxu0 0
    %1055 = vmatprep.subr.bf16.mxu0 0
    %1056 = vmatpush1.bf16.msra.mxu0 0
    %1057 = vmatprep.subr.bf16.mxu0 0
    %1058 = vmatpush1.bf16.msra.mxu0 0
    %1059 = vmatprep.subr.bf16.mxu0 0
    %1060 = vmatpush1.bf16.msra.mxu0 0
    %1061 = vmatprep.subr.bf16.mxu0 0
    %1062 = vmatpush1.bf16.msra.mxu0 0
    %1063 = vmatprep.subr.bf16.mxu0 0
    %1064 = vmatpush1.bf16.msra.mxu0 0
    %1065 = vmatprep.subr.bf16.mxu0 0
    %1066 = vmatpush1.bf16.msra.mxu0 0
    %1067 = vmatprep.subr.bf16.mxu0 0
    %1068 = vmatpush1.bf16.msra.mxu0 0
    %1069 = vmatprep.mubr.bf16.mxu0 0
    %1070 = vmatmul.mubr.bf16.gmra.mrb[0].mxu0 0
    %v1071 = vpop.f32.mrb[0].mxu0
    %v1072 = vadd.f32 0.0, %v1071
    %v1073 = vpop.f32.mrb[0].mxu0
    %v1074 = vpop.f32.mrb[0].mxu0
    %v1075 = vpop.f32.mrb[0].mxu0
    %1076 = vdwg.mxu0
    %v1077 = vadd.f32 %v988, %v1072
    %v1078 = vtanh.pop %v1077
    %v1079 = vsel %vm408, %v1078, 0.0
    %1080 = vst [vmem:[#allocation2] sm:$0xff] %v1079
    %v1081 = vld [vmem:[%s411] sm:$0xff]
    %v1082 = vpack.c.bf16 %v1079, %v1079
    %1083 = vmatprep.subr.bf16.mxu0 0
    %1084 = vmatpush1.bf16.msra.mxu0 %v1021
    %1085 = vmatprep.subr.bf16.mxu0 0
    %1086 = vmatpush1.bf16.msra.mxu0 %v1022
    %1087 = vmatprep.subr.bf16.mxu0 0
    %1088 = vmatpush1.bf16.msra.mxu0 %v1023
    %1089 = vmatprep.subr.bf16.mxu0 0
    %1090 = vmatpush1.bf16.msra.mxu0 %v1024
    %1091 = vmatprep.subr.bf16.mxu0 0
    %1092 = vmatpush1.bf16.msra.mxu0 %v1025
    %1093 = vmatprep.subr.bf16.mxu0 0
    %1094 = vmatpush1.bf16.msra.mxu0 %v1026
    %1095 = vmatprep.subr.bf16.mxu0 0
    %1096 = vmatpush1.bf16.msra.mxu0 %v1027
    %1097 = vmatprep.subr.bf16.mxu0 0
    %1098 = vmatpush1.bf16.msra.mxu0 %v1028
    %1099 = vmatprep.subr.bf16.mxu0 0
    %1100 = vmatpush1.bf16.msra.mxu0 0
    %1101 = vmatprep.subr.bf16.mxu0 0
    %1102 = vmatpush1.bf16.msra.mxu0 0
    %1103 = vmatprep.subr.bf16.mxu0 0
    %1104 = vmatpush1.bf16.msra.mxu0 0
    %1105 = vmatprep.subr.bf16.mxu0 0
    %1106 = vmatpush1.bf16.msra.mxu0 0
    %1107 = vmatprep.subr.bf16.mxu0 0
    %1108 = vmatpush1.bf16.msra.mxu0 0
    %1109 = vmatprep.subr.bf16.mxu0 0
    %1110 = vmatpush1.bf16.msra.mxu0 0
    %1111 = vmatprep.subr.bf16.mxu0 0
    %1112 = vmatpush1.bf16.msra.mxu0 0
    %1113 = vmatprep.subr.bf16.mxu0 0
    %1114 = vmatpush1.bf16.msra.mxu0 0
    %1115 = vmatprep.mubr.bf16.mxu0 0
    %1116 = vmatmul.mubr.bf16.gmra.mrb[0].mxu0 %v1082
    %v1117 = vpop.f32.mrb[0].mxu0
    %v1118 = vadd.f32 0.0, %v1117
    %v1119 = vpop.f32.mrb[0].mxu0
    %v1120 = vpop.f32.mrb[0].mxu0
    %v1121 = vpop.f32.mrb[0].mxu0
    %1122 = vdwg.mxu0
    %v1123 = vadd.f32 %v1081, %v1118
    %v1124 = vtanh.pop %v1123
    %v1125 = vsel %vm461, %v1124, 0.0
    %1126 = vst [vmem:[%s411] sm:$0xff] %v1125
    %v1127 = vsel %vm461, %v1124, %v1079
    %v1128 = vld [vmem:[%s465] sm:$0xff]
    %v1129 = vpack.c.bf16 %v1127, %v1127
    %1130 = vmatprep.subr.bf16.mxu0 0
    %1131 = vmatpush1.bf16.msra.mxu0 %v1021
    %1132 = vmatprep.subr.bf16.mxu0 0
    %1133 = vmatpush1.bf16.msra.mxu0 %v1022
    %1134 = vmatprep.subr.bf16.mxu0 0
    %1135 = vmatpush1.bf16.msra.mxu0 %v1023
    %1136 = vmatprep.subr.bf16.mxu0 0
    %1137 = vmatpush1.bf16.msra.mxu0 %v1024
    %1138 = vmatprep.subr.bf16.mxu0 0
    %1139 = vmatpush1.bf16.msra.mxu0 %v1025
    %1140 = vmatprep.subr.bf16.mxu0 0
    %1141 = vmatpush1.bf16.msra.mxu0 %v1026
    %1142 = vmatprep.subr.bf16.mxu0 0
    %1143 = vmatpush1.bf16.msra.mxu0 %v1027
    %1144 = vmatprep.subr.bf16.mxu0 0
    %1145 = vmatpush1.bf16.msra.mxu0 %v1028
    %1146 = vmatprep.subr.bf16.mxu0 0
    %1147 = vmatpush1.bf16.msra.mxu0 0
    %1148 = vmatprep.subr.bf16.mxu0 0
    %1149 = vmatpush1.bf16.msra.mxu0 0
    %1150 = vmatprep.subr.bf16.mxu0 0
    %1151 = vmatpush1.bf16.msra.mxu0 0
    %1152 = vmatprep.subr.bf16.mxu0 0
    %1153 = vmatpush1.bf16.msra.mxu0 0
    %1154 = vmatprep.subr.bf16.mxu0 0
    %1155 = vmatpush1.bf16.msra.mxu0 0
    %1156 = vmatprep.subr.bf16.mxu0 0
    %1157 = vmatpush1.bf16.msra.mxu0 0
    %1158 = vmatprep.subr.bf16.mxu0 0
    %1159 = vmatpush1.bf16.msra.mxu0 0
    %1160 = vmatprep.subr.bf16.mxu0 0
    %1161 = vmatpush1.bf16.msra.mxu0 0
    %1162 = vmatprep.mubr.bf16.mxu0 0
    %1163 = vmatmul.mubr.bf16.gmra.mrb[0].mxu0 %v1129
    %v1164 = vpop.f32.mrb[0].mxu0
    %v1165 = vadd.f32 0.0, %v1164
    %v1166 = vpop.f32.mrb[0].mxu0
    %v1167 = vpop.f32.mrb[0].mxu0
    %v1168 = vpop.f32.mrb[0].mxu0
    %1169 = vdwg.mxu0
    %v1170 = vadd.f32 %v1128, %v1165
    %v1171 = vtanh.pop %v1170
    %v1172 = vsel %vm515, %v1171, 0.0
    %1173 = vst [vmem:[%s465] sm:$0xff] %v1172
    %v1174 = vsel %vm515, %v1171, %v1127
    %v1175 = vld [vmem:[%s519] sm:$0xff]
    %v1176 = vpack.c.bf16 %v1174, %v1174
    %1177 = vmatprep.subr.bf16.mxu0 0
    %1178 = vmatpush1.bf16.msra.mxu0 %v1021
    %1179 = vmatprep.subr.bf16.mxu0 0
    %1180 = vmatpush1.bf16.msra.mxu0 %v1022
    %1181 = vmatprep.subr.bf16.mxu0 0
    %1182 = vmatpush1.bf16.msra.mxu0 %v1023
    %1183 = vmatprep.subr.bf16.mxu0 0
    %1184 = vmatpush1.bf16.msra.mxu0 %v1024
    %1185 = vmatprep.subr.bf16.mxu0 0
    %1186 = vmatpush1.bf16.msra.mxu0 %v1025
    %1187 = vmatprep.subr.bf16.mxu0 0
    %1188 = vmatpush1.bf16.msra.mxu0 %v1026
    %1189 = vmatprep.subr.bf16.mxu0 0
    %1190 = vmatpush1.bf16.msra.mxu0 %v1027
    %1191 = vmatprep.subr.bf16.mxu0 0
    %1192 = vmatpush1.bf16.msra.mxu0 %v1028
    %1193 = vmatprep.subr.bf16.mxu0 0
    %1194 = vmatpush1.bf16.msra.mxu0 0
    %1195 = vmatprep.subr.bf16.mxu0 0
    %1196 = vmatpush1.bf16.msra.mxu0 0
    %1197 = vmatprep.subr.bf16.mxu0 0
    %1198 = vmatpush1.bf16.msra.mxu0 0
    %1199 = vmatprep.subr.bf16.mxu0 0
    %1200 = vmatpush1.bf16.msra.mxu0 0
    %1201 = vmatprep.subr.bf16.mxu0 0
    %1202 = vmatpush1.bf16.msra.mxu0 0
    %1203 = vmatprep.subr.bf16.mxu0 0
    %1204 = vmatpush1.bf16.msra.mxu0 0
    %1205 = vmatprep.subr.bf16.mxu0 0
    %1206 = vmatpush1.bf16.msra.mxu0 0
    %1207 = vmatprep.subr.bf16.mxu0 0
    %1208 = vmatpush1.bf16.msra.mxu0 0
    %1209 = vmatprep.mubr.bf16.mxu0 0
    %1210 = vmatmul.mubr.bf16.gmra.mrb[0].mxu0 %v1176
    %v1211 = vpop.f32.mrb[0].mxu0
    %v1212 = vadd.f32 0.0, %v1211
    %v1213 = vpop.f32.mrb[0].mxu0
    %v1214 = vpop.f32.mrb[0].mxu0
    %v1215 = vpop.f32.mrb[0].mxu0
    %1216 = vdwg.mxu0
    %v1217 = vadd.f32 %v1175, %v1212
    %v1218 = vtanh.pop %v1217
    %v1219 = vsel %vm569, %v1218, 0.0
    %1220 = vst [vmem:[%s519] sm:$0xff] %v1219
    %v1221 = vsel %vm569, %v1218, %v1174
    %v1222 = vld [vmem:[%s573] sm:$0xff]
    %v1223 = vpack.c.bf16 %v1221, %v1221
    %1224 = vmatprep.subr.bf16.mxu0 0
    %1225 = vmatpush1.bf16.msra.mxu0 %v1021
    %1226 = vmatprep.subr.bf16.mxu0 0
    %1227 = vmatpush1.bf16.msra.mxu0 %v1022
    %1228 = vmatprep.subr.bf16.mxu0 0
    %1229 = vmatpush1.bf16.msra.mxu0 %v1023
    %1230 = vmatprep.subr.bf16.mxu0 0
    %1231 = vmatpush1.bf16.msra.mxu0 %v1024
    %1232 = vmatprep.subr.bf16.mxu0 0
    %1233 = vmatpush1.bf16.msra.mxu0 %v1025
    %1234 = vmatprep.subr.bf16.mxu0 0
    %1235 = vmatpush1.bf16.msra.mxu0 %v1026
    %1236 = vmatprep.subr.bf16.mxu0 0
    %1237 = vmatpush1.bf16.msra.mxu0 %v1027
    %1238 = vmatprep.subr.bf16.mxu0 0
    %1239 = vmatpush1.bf16.msra.mxu0 %v1028
    %1240 = vmatprep.subr.bf16.mxu0 0
    %1241 = vmatpush1.bf16.msra.mxu0 0
    %1242 = vmatprep.subr.bf16.mxu0 0
    %1243 = vmatpush1.bf16.msra.mxu0 0
    %1244 = vmatprep.subr.bf16.mxu0 0
    %1245 = vmatpush1.bf16.msra.mxu0 0
    %1246 = vmatprep.subr.bf16.mxu0 0
    %1247 = vmatpush1.bf16.msra.mxu0 0
    %1248 = vmatprep.subr.bf16.mxu0 0
    %1249 = vmatpush1.bf16.msra.mxu0 0
    %1250 = vmatprep.subr.bf16.mxu0 0
    %1251 = vmatpush1.bf16.msra.mxu0 0
    %1252 = vmatprep.subr.bf16.mxu0 0
    %1253 = vmatpush1.bf16.msra.mxu0 0
    %1254 = vmatprep.subr.bf16.mxu0 0
    %1255 = vmatpush1.bf16.msra.mxu0 0
    %1256 = vmatprep.mubr.bf16.mxu0 0
    %1257 = vmatmul.mubr.bf16.gmra.mrb[0].mxu0 %v1223
    %v1258 = vpop.f32.mrb[0].mxu0
    %v1259 = vadd.f32 0.0, %v1258
    %v1260 = vpop.f32.mrb[0].mxu0
    %v1261 = vpop.f32.mrb[0].mxu0
    %v1262 = vpop.f32.mrb[0].mxu0
    %1263 = vdwg.mxu0
    %v1264 = vadd.f32 %v1222, %v1259
    %v1265 = vtanh.pop %v1264
    %v1266 = vsel %vm623, %v1265, 0.0
    %1267 = vst [vmem:[%s573] sm:$0xff] %v1266
    %v1268 = vsel %vm623, %v1265, %v1221
    %v1269 = vld [vmem:[%s627] sm:$0xff]
    %v1270 = vpack.c.bf16 %v1268, %v1268
    %1271 = vmatprep.subr.bf16.mxu0 0
    %1272 = vmatpush1.bf16.msra.mxu0 %v1021
    %1273 = vmatprep.subr.bf16.mxu0 0
    %1274 = vmatpush1.bf16.msra.mxu0 %v1022
    %1275 = vmatprep.subr.bf16.mxu0 0
    %1276 = vmatpush1.bf16.msra.mxu0 %v1023
    %1277 = vmatprep.subr.bf16.mxu0 0
    %1278 = vmatpush1.bf16.msra.mxu0 %v1024
    %1279 = vmatprep.subr.bf16.mxu0 0
    %1280 = vmatpush1.bf16.msra.mxu0 %v1025
    %1281 = vmatprep.subr.bf16.mxu0 0
    %1282 = vmatpush1.bf16.msra.mxu0 %v1026
    %1283 = vmatprep.subr.bf16.mxu0 0
    %1284 = vmatpush1.bf16.msra.mxu0 %v1027
    %1285 = vmatprep.subr.bf16.mxu0 0
    %1286 = vmatpush1.bf16.msra.mxu0 %v1028
    %1287 = vmatprep.subr.bf16.mxu0 0
    %1288 = vmatpush1.bf16.msra.mxu0 0
    %1289 = vmatprep.subr.bf16.mxu0 0
    %1290 = vmatpush1.bf16.msra.mxu0 0
    %1291 = vmatprep.subr.bf16.mxu0 0
    %1292 = vmatpush1.bf16.msra.mxu0 0
    %1293 = vmatprep.subr.bf16.mxu0 0
    %1294 = vmatpush1.bf16.msra.mxu0 0
    %1295 = vmatprep.subr.bf16.mxu0 0
    %1296 = vmatpush1.bf16.msra.mxu0 0
    %1297 = vmatprep.subr.bf16.mxu0 0
    %1298 = vmatpush1.bf16.msra.mxu0 0
    %1299 = vmatprep.subr.bf16.mxu0 0
    %1300 = vmatpush1.bf16.msra.mxu0 0
    %1301 = vmatprep.subr.bf16.mxu0 0
    %1302 = vmatpush1.bf16.msra.mxu0 0
    %1303 = vmatprep.mubr.bf16.mxu0 0
    %1304 = vmatmul.mubr.bf16.gmra.mrb[0].mxu0 %v1270
    %v1305 = vpop.f32.mrb[0].mxu0
    %v1306 = vadd.f32 0.0, %v1305
    %v1307 = vpop.f32.mrb[0].mxu0
    %v1308 = vpop.f32.mrb[0].mxu0
    %v1309 = vpop.f32.mrb[0].mxu0
    %1310 = vdwg.mxu0
    %v1311 = vadd.f32 %v1269, %v1306
    %v1312 = vtanh.pop %v1311
    %v1313 = vsel %vm677, %v1312, 0.0
    %1314 = vst [vmem:[%s627] sm:$0xff] %v1313
    %v1315 = vsel %vm677, %v1312, %v1268
    %v1316 = vld [vmem:[%s681] sm:$0xff]
    %v1317 = vpack.c.bf16 %v1315, %v1315
    %1318 = vmatprep.subr.bf16.mxu0 0
    %1319 = vmatpush1.bf16.msra.mxu0 %v1021
    %1320 = vmatprep.subr.bf16.mxu0 0
    %1321 = vmatpush1.bf16.msra.mxu0 %v1022
    %1322 = vmatprep.subr.bf16.mxu0 0
    %1323 = vmatpush1.bf16.msra.mxu0 %v1023
    %1324 = vmatprep.subr.bf16.mxu0 0
    %1325 = vmatpush1.bf16.msra.mxu0 %v1024
    %1326 = vmatprep.subr.bf16.mxu0 0
    %1327 = vmatpush1.bf16.msra.mxu0 %v1025
    %1328 = vmatprep.subr.bf16.mxu0 0
    %1329 = vmatpush1.bf16.msra.mxu0 %v1026
    %1330 = vmatprep.subr.bf16.mxu0 0
    %1331 = vmatpush1.bf16.msra.mxu0 %v1027
    %1332 = vmatprep.subr.bf16.mxu0 0
    %1333 = vmatpush1.bf16.msra.mxu0 %v1028
    %1334 = vmatprep.subr.bf16.mxu0 0
    %1335 = vmatpush1.bf16.msra.mxu0 0
    %1336 = vmatprep.subr.bf16.mxu0 0
    %1337 = vmatpush1.bf16.msra.mxu0 0
    %1338 = vmatprep.subr.bf16.mxu0 0
    %1339 = vmatpush1.bf16.msra.mxu0 0
    %1340 = vmatprep.subr.bf16.mxu0 0
    %1341 = vmatpush1.bf16.msra.mxu0 0
    %1342 = vmatprep.subr.bf16.mxu0 0
    %1343 = vmatpush1.bf16.msra.mxu0 0
    %1344 = vmatprep.subr.bf16.mxu0 0
    %1345 = vmatpush1.bf16.msra.mxu0 0
    %1346 = vmatprep.subr.bf16.mxu0 0
    %1347 = vmatpush1.bf16.msra.mxu0 0
    %1348 = vmatprep.subr.bf16.mxu0 0
    %1349 = vmatpush1.bf16.msra.mxu0 0
    %1350 = vmatprep.mubr.bf16.mxu0 0
    %1351 = vmatmul.mubr.bf16.gmra.mrb[0].mxu0 %v1317
    %v1352 = vpop.f32.mrb[0].mxu0
    %v1353 = vadd.f32 0.0, %v1352
    %v1354 = vpop.f32.mrb[0].mxu0
    %v1355 = vpop.f32.mrb[0].mxu0
    %v1356 = vpop.f32.mrb[0].mxu0
    %1357 = vdwg.mxu0
    %v1358 = vadd.f32 %v1316, %v1353
    %v1359 = vtanh.pop %v1358
    %v1360 = vsel %vm731, %v1359, 0.0
    %1361 = vst [vmem:[%s681] sm:$0xff] %v1360
    %v1362 = vsel %vm731, %v1359, %v1315
    %v1363 = vld [vmem:[%s735] sm:$0xff]
    %v1364 = vpack.c.bf16 %v1362, %v1362
    %1365 = vmatprep.subr.bf16.mxu0 0
    %1366 = vmatpush1.bf16.msra.mxu0 %v1021
    %1367 = vmatprep.subr.bf16.mxu0 0
    %1368 = vmatpush1.bf16.msra.mxu0 %v1022
    %1369 = vmatprep.subr.bf16.mxu0 0
    %1370 = vmatpush1.bf16.msra.mxu0 %v1023
    %1371 = vmatprep.subr.bf16.mxu0 0
    %1372 = vmatpush1.bf16.msra.mxu0 %v1024
    %1373 = vmatprep.subr.bf16.mxu0 0
    %1374 = vmatpush1.bf16.msra.mxu0 %v1025
    %1375 = vmatprep.subr.bf16.mxu0 0
    %1376 = vmatpush1.bf16.msra.mxu0 %v1026
    %1377 = vmatprep.subr.bf16.mxu0 0
    %1378 = vmatpush1.bf16.msra.mxu0 %v1027
    %1379 = vmatprep.subr.bf16.mxu0 0
    %1380 = vmatpush1.bf16.msra.mxu0 %v1028
    %1381 = vmatprep.subr.bf16.mxu0 0
    %1382 = vmatpush1.bf16.msra.mxu0 0
    %1383 = vmatprep.subr.bf16.mxu0 0
    %1384 = vmatpush1.bf16.msra.mxu0 0
    %1385 = vmatprep.subr.bf16.mxu0 0
    %1386 = vmatpush1.bf16.msra.mxu0 0
    %1387 = vmatprep.subr.bf16.mxu0 0
    %1388 = vmatpush1.bf16.msra.mxu0 0
    %1389 = vmatprep.subr.bf16.mxu0 0
    %1390 = vmatpush1.bf16.msra.mxu0 0
    %1391 = vmatprep.subr.bf16.mxu0 0
    %1392 = vmatpush1.bf16.msra.mxu0 0
    %1393 = vmatprep.subr.bf16.mxu0 0
    %1394 = vmatpush1.bf16.msra.mxu0 0
    %1395 = vmatprep.subr.bf16.mxu0 0
    %1396 = vmatpush1.bf16.msra.mxu0 0
    %1397 = vmatprep.mubr.bf16.mxu0 0
    %1398 = vmatmul.mubr.bf16.gmra.mrb[0].mxu0 %v1364
    %v1399 = vpop.f32.mrb[0].mxu0
    %v1400 = vadd.f32 0.0, %v1399
    %v1401 = vpop.f32.mrb[0].mxu0
    %v1402 = vpop.f32.mrb[0].mxu0
    %v1403 = vpop.f32.mrb[0].mxu0
    %1404 = vdwg.mxu0
    %v1405 = vadd.f32 %v1363, %v1400
    %v1406 = vtanh.pop %v1405
    %v1407 = vsel %vm785, %v1406, 0.0
    %1408 = vst [vmem:[%s735] sm:$0xff] %v1407
    %v1409 = vld [vmem:[#allocation2] sm:$0xff]
    %v1410 = vld [vmem:[#allocation2 + $0x8] sm:$0xff]
    %v1411 = vld [vmem:[#allocation2 + $0x10] sm:$0xff]
    %v1412 = vld [vmem:[#allocation2 + $0x18] sm:$0xff]
    %v1413 = vld [vmem:[#allocation2 + $0x20] sm:$0xff]
    %v1414 = vld [vmem:[#allocation2 + $0x28] sm:$0xff]
    %v1415 = vld [vmem:[#allocation2 + $0x30] sm:$0xff]
    %v1416 = vld [vmem:[#allocation2 + $0x38] sm:$0xff]
    %v1417 = vpack.c.bf16 %v1410, %v1409
    %v1418 = vpack.c.bf16 %v1412, %v1411
    %v1419 = vpack.c.bf16 %v1414, %v1413
    %v1420 = vpack.c.bf16 %v1416, %v1415
    %v1421 = vld [vmem:[#allocation12] sm:$0xf]
    %v1422 = vld [vmem:[#allocation12 + $0x4] sm:$0xf]
    %v1423 = vld [vmem:[#allocation12 + $0x8] sm:$0xf]
    %v1424 = vld [vmem:[#allocation12 + $0xc] sm:$0xf]
    %v1425 = vld [vmem:[#allocation12 + $0x10] sm:$0xf]
    %v1426 = vld [vmem:[#allocation12 + $0x14] sm:$0xf]
    %v1427 = vld [vmem:[#allocation12 + $0x18] sm:$0xf]
    %v1428 = vld [vmem:[#allocation12 + $0x1c] sm:$0xf]
    %v1429 = vld [vmem:[#allocation12 + $0x20] sm:$0xf]
    %v1430 = vld [vmem:[#allocation12 + $0x24] sm:$0xf]
    %v1431 = vld [vmem:[#allocation12 + $0x28] sm:$0xf]
    %v1432 = vld [vmem:[#allocation12 + $0x2c] sm:$0xf]
    %v1433 = vld [vmem:[#allocation12 + $0x30] sm:$0xf]
    %v1434 = vld [vmem:[#allocation12 + $0x34] sm:$0xf]
    %v1435 = vld [vmem:[#allocation12 + $0x38] sm:$0xf]
    %v1436 = vld [vmem:[#allocation12 + $0x3c] sm:$0xf]
    %v1437 = vld [vmem:[%s9] sm:$0x1]
    %v1439 = vlaneseq
    %v1440 = vshrl.u32 %v1439, 7
    %v1441 = vsub.s32 0, %v1440
    %v1442 = vrot.slane %v1437, %v1441
    %v1460 = vunpack.c.l.b16 %v1421
    %v1461 = vunpack.c.l.b16 %v1422
    %v1462 = vunpack.c.l.b16 %v1423
    %v1463 = vunpack.c.l.b16 %v1424
    %v1464 = vunpack.c.l.b16 %v1425
    %v1465 = vunpack.c.l.b16 %v1426
    %v1466 = vunpack.c.l.b16 %v1427
    %v1467 = vunpack.c.l.b16 %v1428
    %v1468 = vunpack.c.l.b16 %v1429
    %v1469 = vunpack.c.l.b16 %v1430
    %v1470 = vunpack.c.l.b16 %v1431
    %v1471 = vunpack.c.l.b16 %v1432
    %v1472 = vunpack.c.l.b16 %v1433
    %v1473 = vunpack.c.l.b16 %v1434
    %v1474 = vunpack.c.l.b16 %v1435
    %v1475 = vunpack.c.l.b16 %v1436
    %v1476 = vpack.c.b16 %v1461, %v1460
    %v1477 = vpack.c.b16 %v1463, %v1462
    %v1478 = vpack.c.b16 %v1465, %v1464
    %v1479 = vpack.c.b16 %v1467, %v1466
    %v1480 = vpack.c.b16 %v1469, %v1468
    %v1481 = vpack.c.b16 %v1471, %v1470
    %v1482 = vpack.c.b16 %v1473, %v1472
    %v1483 = vpack.c.b16 %v1475, %v1474
    %1492 = vmatprep.subr.bf16.mxu0 0
    %1493 = vmatpush1.bf16.msra.mxu0 %v1476
    %1494 = vmatprep.subr.bf16.mxu0 0
    %1495 = vmatpush1.bf16.msra.mxu0 %v1477
    %1496 = vmatprep.subr.bf16.mxu0 0
    %1497 = vmatpush1.bf16.msra.mxu0 %v1478
    %1498 = vmatprep.subr.bf16.mxu0 0
    %1499 = vmatpush1.bf16.msra.mxu0 %v1479
    %1500 = vmatprep.subr.bf16.mxu0 0
    %1501 = vmatpush1.bf16.msra.mxu0 %v1480
    %1502 = vmatprep.subr.bf16.mxu0 0
    %1503 = vmatpush1.bf16.msra.mxu0 %v1481
    %1504 = vmatprep.subr.bf16.mxu0 0
    %1505 = vmatpush1.bf16.msra.mxu0 %v1482
    %1506 = vmatprep.subr.bf16.mxu0 0
    %1507 = vmatpush1.bf16.msra.mxu0 %v1483
    %1508 = vmatprep.subr.bf16.mxu0 0
    %1509 = vmatpush1.bf16.msra.mxu0 0
    %1510 = vmatprep.subr.bf16.mxu0 0
    %1511 = vmatpush1.bf16.msra.mxu0 0
    %1512 = vmatprep.subr.bf16.mxu0 0
    %1513 = vmatpush1.bf16.msra.mxu0 0
    %1514 = vmatprep.subr.bf16.mxu0 0
    %1515 = vmatpush1.bf16.msra.mxu0 0
    %1516 = vmatprep.subr.bf16.mxu0 0
    %1517 = vmatpush1.bf16.msra.mxu0 0
    %1518 = vmatprep.subr.bf16.mxu0 0
    %1519 = vmatpush1.bf16.msra.mxu0 0
    %1520 = vmatprep.subr.bf16.mxu0 0
    %1521 = vmatpush1.bf16.msra.mxu0 0
    %1522 = vmatprep.subr.bf16.mxu0 0
    %1523 = vmatpush1.bf16.msra.mxu0 0
    %1524 = vmatprep.mubr.bf16.mxu0 0
    %1525 = vmatmul.mubr.bf16.gmra.mrb[0].mxu0 %v1417
    %v1526 = vpop.f32.mrb[0].mxu0
    %v1527 = vadd.f32 %v1442, %v1526
    %v1528 = vpop.f32.mrb[0].mxu0
    %v1529 = vpop.f32.mrb[0].mxu0
    %v1530 = vadd.f32 %v1442, %v1529
    %v1531 = vpop.f32.mrb[0].mxu0
    %1532 = vmatprep.mubr.bf16.mxu0 0
    %1533 = vmatmul.mubr.bf16.gmra.mrb[0].mxu0 %v1418
    %v1534 = vpop.f32.mrb[0].mxu0
    %v1535 = vadd.f32 %v1442, %v1534
    %v1536 = vpop.f32.mrb[0].mxu0
    %v1537 = vpop.f32.mrb[0].mxu0
    %v1538 = vadd.f32 %v1442, %v1537
    %v1539 = vpop.f32.mrb[0].mxu0
    %1540 = vmatprep.mubr.bf16.mxu0 0
    %1541 = vmatmul.mubr.bf16.gmra.mrb[0].mxu0 %v1419
    %v1542 = vpop.f32.mrb[0].mxu0
    %v1543 = vadd.f32 %v1442, %v1542
    %v1544 = vpop.f32.mrb[0].mxu0
    %v1545 = vpop.f32.mrb[0].mxu0
    %v1546 = vadd.f32 %v1442, %v1545
    %v1547 = vpop.f32.mrb[0].mxu0
    %1548 = vmatprep.mubr.bf16.mxu0 0
    %1549 = vmatmul.mubr.bf16.gmra.mrb[0].mxu0 %v1420
    %v1550 = vpop.f32.mrb[0].mxu0
    %v1551 = vadd.f32 %v1442, %v1550
    %v1552 = vpop.f32.mrb[0].mxu0
    %v1553 = vpop.f32.mrb[0].mxu0
    %v1554 = vadd.f32 %v1442, %v1553
    %v1555 = vpop.f32.mrb[0].mxu0
    %1556 = vdwg.mxu0
    %v1557 = vxor.u32 %v1527, 2147483648
    %v1558 = vxor.u32 %v1530, 2147483648
    %v1559 = vxor.u32 %v1535, 2147483648
    %v1560 = vxor.u32 %v1538, 2147483648
    %v1561 = vxor.u32 %v1543, 2147483648
    %v1562 = vxor.u32 %v1546, 2147483648
    %v1563 = vxor.u32 %v1551, 2147483648
    %v1564 = vxor.u32 %v1554, 2147483648
    %v1565 = vmul.f32 %v1557, 1.442695
    %v1566 = vpow.pop %v1565
    %v1567 = vmul.f32 %v1558, 1.442695
    %v1568 = vpow.pop %v1567
    %v1569 = vmul.f32 %v1559, 1.442695
    %v1570 = vpow.pop %v1569
    %v1571 = vmul.f32 %v1560, 1.442695
    %v1572 = vpow.pop %v1571
    %v1573 = vmul.f32 %v1561, 1.442695
    %v1574 = vpow.pop %v1573
    %v1575 = vmul.f32 %v1562, 1.442695
    %v1576 = vpow.pop %v1575
    %v1577 = vmul.f32 %v1563, 1.442695
    %v1578 = vpow.pop %v1577
    %v1579 = vmul.f32 %v1564, 1.442695
    %v1580 = vpow.pop %v1579
    %v1581 = vadd.f32 %v1566, 1.0
    %v1582 = vadd.f32 %v1568, 1.0
    %v1583 = vadd.f32 %v1570, 1.0
    %v1584 = vadd.f32 %v1572, 1.0
    %v1585 = vadd.f32 %v1574, 1.0
    %v1586 = vadd.f32 %v1576, 1.0
    %v1587 = vadd.f32 %v1578, 1.0
    %v1588 = vadd.f32 %v1580, 1.0
    %v1589 = vrcp.pop %v1581
    %v1590 = vmul.f32 1.0, %v1589
    %v1591 = vrcp.pop %v1582
    %v1592 = vmul.f32 1.0, %v1591
    %v1593 = vrcp.pop %v1583
    %v1594 = vmul.f32 1.0, %v1593
    %v1595 = vrcp.pop %v1584
    %v1596 = vmul.f32 1.0, %v1595
    %v1597 = vrcp.pop %v1585
    %v1598 = vmul.f32 1.0, %v1597
    %v1599 = vrcp.pop %v1586
    %v1600 = vmul.f32 1.0, %v1599
    %v1601 = vrcp.pop %v1587
    %v1602 = vmul.f32 1.0, %v1601
    %v1603 = vrcp.pop %v1588
    %v1604 = vmul.f32 1.0, %v1603
    %1605 = vst [vmem:[#allocation14] sm:$0xff] %v1590
    %1606 = vst [vmem:[#allocation14 + $0x8] sm:$0xff] %v1592
    %1607 = vst [vmem:[#allocation14 + $0x10] sm:$0xff] %v1594
    %1608 = vst [vmem:[#allocation14 + $0x18] sm:$0xff] %v1596
    %1609 = vst [vmem:[#allocation14 + $0x20] sm:$0xff] %v1598
    %1610 = vst [vmem:[#allocation14 + $0x28] sm:$0xff] %v1600
    %1611 = vst [vmem:[#allocation14 + $0x30] sm:$0xff] %v1602
    %1612 = vst [vmem:[#allocation14 + $0x38] sm:$0xff] %v1604
    // Predicated region
    $region66: #{tpu_custom_call.1} parent=1 // pred_check
      _
    $region67: #{tpu_custom_call.1} parent=1 // pred_check_branch
      %1614 = sbr.rel (0) target = $region69
    $region68: #{tpu_custom_call.1} parent=1 // pred_region
      %s1616 = ssub.s32 1024, 1024
      %1617 = vsyncadd [#allocation5], %s1616
      %s1618 = sshll.u32 [#allocation14], 4
      %s1619 = int_to_ptr.vmem [resolvable:$true] %s1618
      %1624 = dma.vmem_to_hbm [thread:$0]  %s1619, 1024, %s10, [#allocation5], 128, 128, 8
    $region69: #{tpu_custom_call.1} parent=1 // pred_fallthru
      _
    // Predicated region
    $region70: #{tpu_custom_call.1} parent=1 // pred_check
      _
    $region71: #{tpu_custom_call.1} parent=1 // pred_check_branch
      %1626 = sbr.rel (0) target = $region73
    $region72: #{tpu_custom_call.1} parent=1 // pred_region
      %1627 = dma.done [#allocation5], 1024
    $region73: #{tpu_custom_call.1} parent=1 // pred_fallthru
      _
    %1628 = vsyncpa [#allocation4], 1
    %1629 = vsyncpa [#allocation7], 1
    %1630 = vsyncpa [#allocation10], 1
    %1631 = vsyncpa [#allocation13], 1
    %1632 = vsyncpa [#allocation5], 1

</llo_original>
